<compile_context>
chip_gen: v5e
topology: v5e:2x2
jax: 0.10.0
libtpu: 0.0.40
codegen_flags: <defaults>
</compile_context>

<pallas_src>
import functools

import numpy as np

import jax
import jax.numpy as jnp
from jax.experimental import pallas as pl
from jax.experimental.pallas import tpu as pltpu

# ----------------------------- config -------------------------------------
BATCH = 2
SEQ = 8              # L
HIDDEN = 32          # base_model.config.hidden_size (small synthetic value)
CONV_OUT = 256       # conv1d out_channels
KSIZE = 3            # conv1d kernel_size
LSTM_HID = 128       # lstm hidden_size (bidirectional -> 256 features)
NUM_CLASSES = 2
SEQ_OUT = SEQ - KSIZE + 1   # "valid" conv, no padding
OUT_PAD = 128        # lane-dense logits store; wrapper slices [:, :NUM_CLASSES]


# --------------------------- fused kernel ----------------------------------
def rcnn_fused_kernel(x_ref, w_in_ref, whh_ref, fcw_ref, b_ref, o_ref, *, hid, ksize):
    # Per grid step (rb batch rows):
    #   x_ref   : (rb, L, H)
    #   w_in_ref: (K, H, 8*hid)   conv folded into fwd||rev LSTM input projection
    #   whh_ref : (hid, 4*hid)    forward hidden->gates (gate-permuted)
    #   fcw_ref : (2*hid, OUT_PAD)
    #   b_ref   : (1, 8*hid + OUT_PAD)  = [b_in_fwd | b_in_rev | fc_bias_padded]
    #   o_ref   : (rb, 1, OUT_PAD)
    rb, L, H = x_ref.shape
    T = L - ksize + 1
    ng = 4 * hid

    bias = b_ref[...]
    b_in = bias[:, :2 * ng]          # folded conv+LSTM input bias (fwd||rev)
    b_fc = bias[:, 2 * ng:]          # padded fc bias

    # ---- conv1d folded into the LSTM input projection: K accumulating MXU taps
    # per sample.  All of this is OFF the serial recurrence chain. ----
    b_in_T = jnp.broadcast_to(b_in, (T, 2 * ng))      # hoisted broadcast
    projs = []
    for b in range(rb):                               # rb is 1 or 2 -> static unroll
        xs = x_ref[b]                                 # (L, H)
        acc = b_in_T
        for k in range(ksize):
            acc = acc + jnp.dot(xs[k:k + T, :], w_in_ref[k],
                                preferred_element_type=jnp.float32)
        projs.append(acc)                             # (T, 8*hid): [:, :ng]=fwd, [:, ng:]=rev

    def stack_rows(rows):
        return rows[0] if rb == 1 else jnp.concatenate(rows, axis=0)

    gin = [stack_rows([projs[b][t:t + 1, :ng] for b in range(rb)]) for t in range(T)]
    # Reverse direction only needs the projection at the LAST position (see below).
    g_rev = stack_rows([projs[b][T - 1:T, ng:] for b in range(rb)])

    # ---- gate math; columns pre-permuted offline to [i, f, o, g] so the three
    # sigmoids act on one contiguous slice and tanh on the trailing hid lanes. ----
    def gates_to_hc(g, c):
        s = jax.nn.sigmoid(g[:, :3 * hid])
        i, f, o = s[:, :hid], s[:, hid:2 * hid], s[:, 2 * hid:]
        gg = jnp.tanh(g[:, 3 * hid:])
        c_new = f * c + i * gg
        return o * jnp.tanh(c_new), c_new

    # ---- forward LSTM recurrence: the serial critical path.  Step 0 starts from
    # a zero state, so its h @ W_hh matmul is skipped. ----
    whh = whh_ref[...]
    h, c = gates_to_hc(gin[0], jnp.zeros((rb, hid), jnp.float32))
    for t in range(1, T):                             # static unroll, T = 6
        g = gin[t] + jnp.dot(h, whh, preferred_element_type=jnp.float32)
        h, c = gates_to_hc(g, c)

    # ---- reverse LSTM: the model reads lstm_out[:, -1, hid:], i.e. the FIRST
    # reverse-direction step from a zero state, so h0 @ W_hh_reverse == 0 and
    # W_hh_reverse is never needed.  NOTE: this shortcut is only valid for the
    # "last position" readout; mean-pooling / full-sequence outputs would break it.
    h_rev, _ = gates_to_hc(g_rev, jnp.zeros((rb, hid), jnp.float32))

    # ---- fc on concat(h_fwd, h_rev); output padded to 128 lanes for an unmasked,
    # lane-dense store (wrapper slices [:, :NUM_CLASSES]). ----
    feat = jnp.concatenate([h, h_rev], axis=-1)       # (rb, 2*hid)
    logits = jnp.dot(feat, fcw_ref[...], preferred_element_type=jnp.float32) + b_fc
    o_ref[...] = logits[:, None, :]


# ------------------------------ wrapper -------------------------------------
def _rows_per_block(batch):
    """Whole batch in one grid step on single-TC chips (v5e/v6e); keep a >=2-step
    'parallel' grid on v7x so both TensorCores get work via megacore sharding."""
    try:
        kind = jax.devices()[0].device_kind.lower()
    except Exception:
        kind = ""
    rows = batch
    if batch >= 2 and ("v7" in kind or "7x" in kind):
        rows = pl.cdiv(batch, 2)
    if rows < 1 or batch % rows != 0:
        rows = 1
    return rows


def rcnn_forward(last_hidden_state, folded, rows_per_block=None):
    # last_hidden_state: (B, L, H) float32 -> logits (B, NUM_CLASSES)
    B, L, H = last_hidden_state.shape
    hid = LSTM_HID
    rb = _rows_per_block(B) if rows_per_block is None else rows_per_block
    grid = (B // rb,)

    out = pl.pallas_call(
        functools.partial(rcnn_fused_kernel, hid=hid, ksize=KSIZE),
        out_shape=jax.ShapeDtypeStruct((B, 1, OUT_PAD), jnp.float32),
        grid=grid,
        in_specs=[
            pl.BlockSpec((rb, L, H), lambda i: (i, 0, 0)),
            pl.BlockSpec((KSIZE, H, 8 * hid), lambda i: (0, 0, 0)),
            pl.BlockSpec((hid, 4 * hid), lambda i: (0, 0)),
            pl.BlockSpec((2 * hid, OUT_PAD), lambda i: (0, 0)),
            pl.BlockSpec((1, 8 * hid + OUT_PAD), lambda i: (0, 0)),
        ],
        out_specs=pl.BlockSpec((rb, 1, OUT_PAD), lambda i: (i, 0, 0)),
        compiler_params=pltpu.CompilerParams(
            dimension_semantics=("parallel",)),
        # ~0.8 MB resident weights (<2 MB with double buffers): far under scoped
        # VMEM on v5e/v6e/v7x -> no vmem_limit / Buffered tuning needed.
    )(last_hidden_state, folded["w_in"], folded["whh"], folded["fc_w"], folded["bias"])
    return out.reshape(B, OUT_PAD)[:, :NUM_CLASSES]


# --------------------- one-time parameter folding (init) --------------------
def fold_params(params):
    """One-time weight transform, done in float64 numpy at init (not per call):
      * gate columns permuted from PyTorch [i, f, g, o] to [i, f, o, g];
      * Conv1d folded into the LSTM input projections (fwd and rev concatenated);
      * conv bias folded into the LSTM input biases;
      * fc weight/bias zero-padded to 128 output lanes;
      * all biases packed into a single row operand."""
    hid = LSTM_HID
    f64 = lambda a: np.asarray(a, dtype=np.float64)
    perm = np.concatenate([np.arange(0, 2 * hid),        # i, f
                           np.arange(3 * hid, 4 * hid),  # o
                           np.arange(2 * hid, 3 * hid)]) # g

    conv_w, conv_b = f64(params["conv_w"]), f64(params["conv_b"])
    wih_f = f64(params["wih_f"])[:, perm]
    whh_f = f64(params["whh_f"])[:, perm]
    b_f = f64(params["b_f"])[:, perm]
    wih_r = f64(params["wih_r"])[:, perm]
    b_r = f64(params["b_r"])[:, perm]

    # w_in[k] = conv_w[k] @ [wih_f | wih_r]  -> (K, H, 8*hid)
    w_in = np.stack(
        [np.concatenate([conv_w[k] @ wih_f, conv_w[k] @ wih_r], axis=1)
         for k in range(KSIZE)], axis=0)

    b_in_f = b_f + conv_b @ wih_f                     # (1, 4*hid)
    b_in_r = b_r + conv_b @ wih_r                     # (1, 4*hid)
    fc_b_pad = np.zeros((1, OUT_PAD), dtype=np.float64)
    fc_b_pad[:, :NUM_CLASSES] = f64(params["fc_b"])
    bias = np.concatenate([b_in_f, b_in_r, fc_b_pad], axis=1)   # (1, 8*hid + OUT_PAD)

    fc_w_pad = np.zeros((2 * hid, OUT_PAD), dtype=np.float64)
    fc_w_pad[:, :NUM_CLASSES] = f64(params["fc_w"])

    # NOTE: whh_r is intentionally absent -- lstm_out[:, -1, hid:] is the first
    # reverse step from a zero state, so the reverse hidden weights never act.
    return {"w_in": jnp.asarray(w_in, jnp.float32),
            "whh": jnp.asarray(whh_f, jnp.float32),
            "fc_w": jnp.asarray(fc_w_pad, jnp.float32),
            "bias": jnp.asarray(bias, jnp.float32)}


# --------------------------- pure-JAX reference -----------------------------
def rcnn_reference(x, params):
    w, b = params["conv_w"], params["conv_b"]
    K = w.shape[0]
    Lout = x.shape[1] - K + 1
    conv = sum(jnp.einsum("blh,hc->blc", x[:, k:k + Lout, :], w[k])
               for k in range(K)) + b

    def step(xt, h, c, wih, whh, bias):
        g = xt @ wih + h @ whh + bias
        i = jax.nn.sigmoid(g[:, :LSTM_HID])
        f = jax.nn.sigmoid(g[:, LSTM_HID:2 * LSTM_HID])
        gg = jnp.tanh(g[:, 2 * LSTM_HID:3 * LSTM_HID])
        o = jax.nn.sigmoid(g[:, 3 * LSTM_HID:])
        c = f * c + i * gg
        return o * jnp.tanh(c), c

    B = x.shape[0]
    T = Lout
    h = jnp.zeros((B, LSTM_HID), jnp.float32)
    c = jnp.zeros_like(h)
    for t in range(T):
        h, c = step(conv[:, t, :], h, c,
                    params["wih_f"], params["whh_f"], params["b_f"])
    h_fwd = h

    hb = jnp.zeros_like(h)
    cb = jnp.zeros_like(h)
    outs_b = []
    for t in reversed(range(T)):
        hb, cb = step(conv[:, t, :], hb, cb,
                      params["wih_r"], params["whh_r"], params["b_r"])
        outs_b.append(hb)
    outs_b = outs_b[::-1]
    h_bwd_last = outs_b[-1]          # reverse hidden at position T-1

    feat = jnp.concatenate([h_fwd, h_bwd_last], axis=-1)
    return feat @ params["fc_w"] + params["fc_b"]


# --------------------------------- main -------------------------------------
def init_params(key):
    ks = jax.random.split(key, 10)
    s = 0.1
    return {
        # conv1d: torch weight (Cout, Cin, K) stored here as (K, Cin, Cout)
        "conv_w": s * jax.random.normal(ks[0], (KSIZE, HIDDEN, CONV_OUT), jnp.float32),
        "conv_b": s * jax.random.normal(ks[1], (1, CONV_OUT), jnp.float32),
        # lstm forward: torch weight_ih_l0 (4H, 256) stored transposed (256, 4H), etc.
        "wih_f": s * jax.random.normal(ks[2], (CONV_OUT, 4 * LSTM_HID), jnp.float32),
        "whh_f": s * jax.random.normal(ks[3], (LSTM_HID, 4 * LSTM_HID), jnp.float32),
        "b_f": s * jax.random.normal(ks[4], (1, 4 * LSTM_HID), jnp.float32),   # b_ih + b_hh combined
        # lstm reverse (whh_r only feeds the reference; the kernel never needs it)
        "wih_r": s * jax.random.normal(ks[5], (CONV_OUT, 4 * LSTM_HID), jnp.float32),
        "whh_r": s * jax.random.normal(ks[6], (LSTM_HID, 4 * LSTM_HID), jnp.float32),
        "b_r": s * jax.random.normal(ks[7], (1, 4 * LSTM_HID), jnp.float32),
        # fc: torch weight (C, 256) stored transposed (256, C)
        "fc_w": s * jax.random.normal(ks[8], (2 * LSTM_HID, NUM_CLASSES), jnp.float32),
        "fc_b": s * jax.random.normal(ks[9], (1, NUM_CLASSES), jnp.float32),
    }


if __name__ == "__main__":
    key = jax.random.PRNGKey(0)
    k_in, k_par = jax.random.split(key)
    # synthetic stand-in for base_model(**inputs).last_hidden_state
    # TODO(synk): the pretrained transformer base_model is not translated; its
    # output embedding is synthesized here as the kernel input.
    last_hidden_state = jax.random.normal(k_in, (BATCH, SEQ, HIDDEN), jnp.float32)
    params = init_params(k_par)
    folded = fold_params(params)          # one-time, at init, in float64

    fwd = jax.jit(rcnn_forward)
    logits = jax.block_until_ready(fwd(last_hidden_state, folded))
    ref = jax.block_until_ready(rcnn_reference(last_hidden_state, params))

    assert logits.shape == (BATCH, NUM_CLASSES), logits.shape
    assert jnp.allclose(logits, ref, atol=2e-4, rtol=2e-4), (logits, ref)
    print("KERNEL_OK")
</pallas_src>

<mosaic_0001>
module attributes {stable_mosaic.version = 11 : i64} {
  func.func @rcnn_fused_kernel(%arg0: i32, %arg1: memref<2x8x32xf32, #tpu.memory_space<vmem>>, %arg2: memref<3x32x1024xf32, #tpu.memory_space<vmem>>, %arg3: memref<128x512xf32, #tpu.memory_space<vmem>>, %arg4: memref<256x128xf32, #tpu.memory_space<vmem>>, %arg5: memref<1x1152xf32, #tpu.memory_space<vmem>>, %arg6: memref<2x1x128xf32, #tpu.memory_space<vmem>>) attributes {dimension_semantics = [#tpu.dimension_semantics<parallel>], iteration_bounds = array<i64: 1>, scalar_prefetch = 0 : i64, scratch_operands = 0 : i64, tpu.core_type = #tpu.core_type<tc>, window_params = [{transform_indices = @transform_0, window_bounds = array<i64: 2, 8, 32>}, {pipeline_mode = #tpu.pipeline_mode<synchronous>, transform_indices = @transform_1, window_bounds = array<i64: 3, 32, 1024>}, {pipeline_mode = #tpu.pipeline_mode<synchronous>, transform_indices = @transform_2, window_bounds = array<i64: 128, 512>}, {pipeline_mode = #tpu.pipeline_mode<synchronous>, transform_indices = @transform_3, window_bounds = array<i64: 256, 128>}, {pipeline_mode = #tpu.pipeline_mode<synchronous>, transform_indices = @transform_4, window_bounds = array<i64: 1, 1152>}, {transform_indices = @transform_5, window_bounds = array<i64: 2, 1, 128>}]} {
    %c0 = arith.constant 0 : index
    %c0_0 = arith.constant 0 : index
    %0 = vector.load %arg5[%c0, %c0_0] : memref<1x1152xf32, #tpu.memory_space<vmem>>, vector<1x1152xf32>
    %1 = vector.extract_strided_slice %0 {offsets = [0, 0], sizes = [1, 1024], strides = [1, 1]} : vector<1x1152xf32> to vector<1x1024xf32>
    %2 = vector.extract_strided_slice %0 {offsets = [0, 1024], sizes = [1, 128], strides = [1, 1]} : vector<1x1152xf32> to vector<1x128xf32>
    %3 = vector.shape_cast %1 : vector<1x1024xf32> to vector<1x1024xf32>
    %4 = vector.broadcast %3 : vector<1x1024xf32> to vector<6x1024xf32>
    %c0_1 = arith.constant 0 : index
    %c0_2 = arith.constant 0 : index
    %c0_3 = arith.constant 0 : index
    %5 = vector.load %arg1[%c0_1, %c0_2, %c0_3] : memref<2x8x32xf32, #tpu.memory_space<vmem>>, vector<1x8x32xf32>
    %6 = vector.shape_cast %5 : vector<1x8x32xf32> to vector<8x32xf32>
    %7 = vector.extract_strided_slice %6 {offsets = [0, 0], sizes = [6, 32], strides = [1, 1]} : vector<8x32xf32> to vector<6x32xf32>
    %c0_4 = arith.constant 0 : index
    %c0_5 = arith.constant 0 : index
    %c0_6 = arith.constant 0 : index
    %8 = vector.load %arg2[%c0_4, %c0_5, %c0_6] : memref<3x32x1024xf32, #tpu.memory_space<vmem>>, vector<1x32x1024xf32>
    %9 = vector.shape_cast %8 : vector<1x32x1024xf32> to vector<32x1024xf32>
    %cst = arith.constant dense<0.000000e+00> : vector<6x1024xf32>
    %10 = tpu.matmul %7, %9, %cst {dimension_numbers = #tpu.dot_dimension_numbers<[1], [0], [0], [1], [0, 0, 1, 1], [], []>} : vector<6x32xf32>, vector<32x1024xf32>, vector<6x1024xf32> -> vector<6x1024xf32>
    %11 = arith.addf %4, %10 : vector<6x1024xf32>
    %12 = vector.extract_strided_slice %6 {offsets = [1, 0], sizes = [6, 32], strides = [1, 1]} : vector<8x32xf32> to vector<6x32xf32>
    %c1 = arith.constant 1 : index
    %c0_7 = arith.constant 0 : index
    %c0_8 = arith.constant 0 : index
    %13 = vector.load %arg2[%c1, %c0_7, %c0_8] : memref<3x32x1024xf32, #tpu.memory_space<vmem>>, vector<1x32x1024xf32>
    %14 = vector.shape_cast %13 : vector<1x32x1024xf32> to vector<32x1024xf32>
    %cst_9 = arith.constant dense<0.000000e+00> : vector<6x1024xf32>
    %15 = tpu.matmul %12, %14, %cst_9 {dimension_numbers = #tpu.dot_dimension_numbers<[1], [0], [0], [1], [0, 0, 1, 1], [], []>} : vector<6x32xf32>, vector<32x1024xf32>, vector<6x1024xf32> -> vector<6x1024xf32>
    %16 = arith.addf %11, %15 : vector<6x1024xf32>
    %17 = vector.extract_strided_slice %6 {offsets = [2, 0], sizes = [6, 32], strides = [1, 1]} : vector<8x32xf32> to vector<6x32xf32>
    %c2 = arith.constant 2 : index
    %c0_10 = arith.constant 0 : index
    %c0_11 = arith.constant 0 : index
    %18 = vector.load %arg2[%c2, %c0_10, %c0_11] : memref<3x32x1024xf32, #tpu.memory_space<vmem>>, vector<1x32x1024xf32>
    %19 = vector.shape_cast %18 : vector<1x32x1024xf32> to vector<32x1024xf32>
    %cst_12 = arith.constant dense<0.000000e+00> : vector<6x1024xf32>
    %20 = tpu.matmul %17, %19, %cst_12 {dimension_numbers = #tpu.dot_dimension_numbers<[1], [0], [0], [1], [0, 0, 1, 1], [], []>} : vector<6x32xf32>, vector<32x1024xf32>, vector<6x1024xf32> -> vector<6x1024xf32>
    %21 = arith.addf %16, %20 : vector<6x1024xf32>
    %c1_13 = arith.constant 1 : index
    %c0_14 = arith.constant 0 : index
    %c0_15 = arith.constant 0 : index
    %22 = vector.load %arg1[%c1_13, %c0_14, %c0_15] : memref<2x8x32xf32, #tpu.memory_space<vmem>>, vector<1x8x32xf32>
    %23 = vector.shape_cast %22 : vector<1x8x32xf32> to vector<8x32xf32>
    %24 = vector.extract_strided_slice %23 {offsets = [0, 0], sizes = [6, 32], strides = [1, 1]} : vector<8x32xf32> to vector<6x32xf32>
    %c0_16 = arith.constant 0 : index
    %c0_17 = arith.constant 0 : index
    %c0_18 = arith.constant 0 : index
    %25 = vector.load %arg2[%c0_16, %c0_17, %c0_18] : memref<3x32x1024xf32, #tpu.memory_space<vmem>>, vector<1x32x1024xf32>
    %26 = vector.shape_cast %25 : vector<1x32x1024xf32> to vector<32x1024xf32>
    %cst_19 = arith.constant dense<0.000000e+00> : vector<6x1024xf32>
    %27 = tpu.matmul %24, %26, %cst_19 {dimension_numbers = #tpu.dot_dimension_numbers<[1], [0], [0], [1], [0, 0, 1, 1], [], []>} : vector<6x32xf32>, vector<32x1024xf32>, vector<6x1024xf32> -> vector<6x1024xf32>
    %28 = arith.addf %4, %27 : vector<6x1024xf32>
    %29 = vector.extract_strided_slice %23 {offsets = [1, 0], sizes = [6, 32], strides = [1, 1]} : vector<8x32xf32> to vector<6x32xf32>
    %c1_20 = arith.constant 1 : index
    %c0_21 = arith.constant 0 : index
    %c0_22 = arith.constant 0 : index
    %30 = vector.load %arg2[%c1_20, %c0_21, %c0_22] : memref<3x32x1024xf32, #tpu.memory_space<vmem>>, vector<1x32x1024xf32>
    %31 = vector.shape_cast %30 : vector<1x32x1024xf32> to vector<32x1024xf32>
    %cst_23 = arith.constant dense<0.000000e+00> : vector<6x1024xf32>
    %32 = tpu.matmul %29, %31, %cst_23 {dimension_numbers = #tpu.dot_dimension_numbers<[1], [0], [0], [1], [0, 0, 1, 1], [], []>} : vector<6x32xf32>, vector<32x1024xf32>, vector<6x1024xf32> -> vector<6x1024xf32>
    %33 = arith.addf %28, %32 : vector<6x1024xf32>
    %34 = vector.extract_strided_slice %23 {offsets = [2, 0], sizes = [6, 32], strides = [1, 1]} : vector<8x32xf32> to vector<6x32xf32>
    %c2_24 = arith.constant 2 : index
    %c0_25 = arith.constant 0 : index
    %c0_26 = arith.constant 0 : index
    %35 = vector.load %arg2[%c2_24, %c0_25, %c0_26] : memref<3x32x1024xf32, #tpu.memory_space<vmem>>, vector<1x32x1024xf32>
    %36 = vector.shape_cast %35 : vector<1x32x1024xf32> to vector<32x1024xf32>
    %cst_27 = arith.constant dense<0.000000e+00> : vector<6x1024xf32>
    %37 = tpu.matmul %34, %36, %cst_27 {dimension_numbers = #tpu.dot_dimension_numbers<[1], [0], [0], [1], [0, 0, 1, 1], [], []>} : vector<6x32xf32>, vector<32x1024xf32>, vector<6x1024xf32> -> vector<6x1024xf32>
    %38 = arith.addf %33, %37 : vector<6x1024xf32>
    %39 = vector.extract_strided_slice %21 {offsets = [0, 0], sizes = [1, 512], strides = [1, 1]} : vector<6x1024xf32> to vector<1x512xf32>
    %40 = vector.extract_strided_slice %38 {offsets = [0, 0], sizes = [1, 512], strides = [1, 1]} : vector<6x1024xf32> to vector<1x512xf32>
    %41 = tpu.concatenate %39, %40 in 0 : vector<1x512xf32>, vector<1x512xf32> -> vector<2x512xf32>
    %42 = vector.extract_strided_slice %21 {offsets = [1, 0], sizes = [1, 512], strides = [1, 1]} : vector<6x1024xf32> to vector<1x512xf32>
    %43 = vector.extract_strided_slice %38 {offsets = [1, 0], sizes = [1, 512], strides = [1, 1]} : vector<6x1024xf32> to vector<1x512xf32>
    %44 = tpu.concatenate %42, %43 in 0 : vector<1x512xf32>, vector<1x512xf32> -> vector<2x512xf32>
    %45 = vector.extract_strided_slice %21 {offsets = [2, 0], sizes = [1, 512], strides = [1, 1]} : vector<6x1024xf32> to vector<1x512xf32>
    %46 = vector.extract_strided_slice %38 {offsets = [2, 0], sizes = [1, 512], strides = [1, 1]} : vector<6x1024xf32> to vector<1x512xf32>
    %47 = tpu.concatenate %45, %46 in 0 : vector<1x512xf32>, vector<1x512xf32> -> vector<2x512xf32>
    %48 = vector.extract_strided_slice %21 {offsets = [3, 0], sizes = [1, 512], strides = [1, 1]} : vector<6x1024xf32> to vector<1x512xf32>
    %49 = vector.extract_strided_slice %38 {offsets = [3, 0], sizes = [1, 512], strides = [1, 1]} : vector<6x1024xf32> to vector<1x512xf32>
    %50 = tpu.concatenate %48, %49 in 0 : vector<1x512xf32>, vector<1x512xf32> -> vector<2x512xf32>
    %51 = vector.extract_strided_slice %21 {offsets = [4, 0], sizes = [1, 512], strides = [1, 1]} : vector<6x1024xf32> to vector<1x512xf32>
    %52 = vector.extract_strided_slice %38 {offsets = [4, 0], sizes = [1, 512], strides = [1, 1]} : vector<6x1024xf32> to vector<1x512xf32>
    %53 = tpu.concatenate %51, %52 in 0 : vector<1x512xf32>, vector<1x512xf32> -> vector<2x512xf32>
    %54 = vector.extract_strided_slice %21 {offsets = [5, 0], sizes = [1, 512], strides = [1, 1]} : vector<6x1024xf32> to vector<1x512xf32>
    %55 = vector.extract_strided_slice %38 {offsets = [5, 0], sizes = [1, 512], strides = [1, 1]} : vector<6x1024xf32> to vector<1x512xf32>
    %56 = tpu.concatenate %54, %55 in 0 : vector<1x512xf32>, vector<1x512xf32> -> vector<2x512xf32>
    %57 = vector.extract_strided_slice %21 {offsets = [5, 512], sizes = [1, 512], strides = [1, 1]} : vector<6x1024xf32> to vector<1x512xf32>
    %58 = vector.extract_strided_slice %38 {offsets = [5, 512], sizes = [1, 512], strides = [1, 1]} : vector<6x1024xf32> to vector<1x512xf32>
    %59 = tpu.concatenate %57, %58 in 0 : vector<1x512xf32>, vector<1x512xf32> -> vector<2x512xf32>
    %c0_28 = arith.constant 0 : index
    %c0_29 = arith.constant 0 : index
    %60 = vector.load %arg3[%c0_28, %c0_29] : memref<128x512xf32, #tpu.memory_space<vmem>>, vector<128x512xf32>
    %cst_30 = arith.constant 0.000000e+00 : f32
    %61 = vector.broadcast %cst_30 : f32 to vector<2x128xf32>
    %62 = vector.extract_strided_slice %41 {offsets = [0, 0], sizes = [2, 384], strides = [1, 1]} : vector<2x512xf32> to vector<2x384xf32>
    %63 = arith.negf %62 : vector<2x384xf32>
    %64 = math.exp %63 : vector<2x384xf32>
    %cst_31 = arith.constant 1.000000e+00 : f32
    %65 = vector.broadcast %cst_31 : f32 to vector<2x384xf32>
    %66 = arith.addf %65, %64 : vector<2x384xf32>
    %67 = arith.divf %65, %66 : vector<2x384xf32>
    %68 = vector.extract_strided_slice %67 {offsets = [0, 0], sizes = [2, 128], strides = [1, 1]} : vector<2x384xf32> to vector<2x128xf32>
    %69 = vector.extract_strided_slice %67 {offsets = [0, 128], sizes = [2, 128], strides = [1, 1]} : vector<2x384xf32> to vector<2x128xf32>
    %70 = vector.extract_strided_slice %67 {offsets = [0, 256], sizes = [2, 128], strides = [1, 1]} : vector<2x384xf32> to vector<2x128xf32>
    %71 = vector.extract_strided_slice %41 {offsets = [0, 384], sizes = [2, 128], strides = [1, 1]} : vector<2x512xf32> to vector<2x128xf32>
    %72 = math.tanh %71 : vector<2x128xf32>
    %73 = arith.mulf %69, %61 : vector<2x128xf32>
    %74 = arith.mulf %68, %72 : vector<2x128xf32>
    %75 = arith.addf %73, %74 : vector<2x128xf32>
    %76 = math.tanh %75 : vector<2x128xf32>
    %77 = arith.mulf %70, %76 : vector<2x128xf32>
    %cst_32 = arith.constant dense<0.000000e+00> : vector<2x512xf32>
    %78 = tpu.matmul %77, %60, %cst_32 {dimension_numbers = #tpu.dot_dimension_numbers<[1], [0], [0], [1], [0, 0, 1, 1], [], []>} : vector<2x128xf32>, vector<128x512xf32>, vector<2x512xf32> -> vector<2x512xf32>
    %79 = arith.addf %44, %78 : vector<2x512xf32>
    %80 = vector.extract_strided_slice %79 {offsets = [0, 0], sizes = [2, 384], strides = [1, 1]} : vector<2x512xf32> to vector<2x384xf32>
    %81 = arith.negf %80 : vector<2x384xf32>
    %82 = math.exp %81 : vector<2x384xf32>
    %cst_33 = arith.constant 1.000000e+00 : f32
    %83 = vector.broadcast %cst_33 : f32 to vector<2x384xf32>
    %84 = arith.addf %83, %82 : vector<2x384xf32>
    %85 = arith.divf %83, %84 : vector<2x384xf32>
    %86 = vector.extract_strided_slice %85 {offsets = [0, 0], sizes = [2, 128], strides = [1, 1]} : vector<2x384xf32> to vector<2x128xf32>
    %87 = vector.extract_strided_slice %85 {offsets = [0, 128], sizes = [2, 128], strides = [1, 1]} : vector<2x384xf32> to vector<2x128xf32>
    %88 = vector.extract_strided_slice %85 {offsets = [0, 256], sizes = [2, 128], strides = [1, 1]} : vector<2x384xf32> to vector<2x128xf32>
    %89 = vector.extract_strided_slice %79 {offsets = [0, 384], sizes = [2, 128], strides = [1, 1]} : vector<2x512xf32> to vector<2x128xf32>
    %90 = math.tanh %89 : vector<2x128xf32>
    %91 = arith.mulf %87, %75 : vector<2x128xf32>
    %92 = arith.mulf %86, %90 : vector<2x128xf32>
    %93 = arith.addf %91, %92 : vector<2x128xf32>
    %94 = math.tanh %93 : vector<2x128xf32>
    %95 = arith.mulf %88, %94 : vector<2x128xf32>
    %cst_34 = arith.constant dense<0.000000e+00> : vector<2x512xf32>
    %96 = tpu.matmul %95, %60, %cst_34 {dimension_numbers = #tpu.dot_dimension_numbers<[1], [0], [0], [1], [0, 0, 1, 1], [], []>} : vector<2x128xf32>, vector<128x512xf32>, vector<2x512xf32> -> vector<2x512xf32>
    %97 = arith.addf %47, %96 : vector<2x512xf32>
    %98 = vector.extract_strided_slice %97 {offsets = [0, 0], sizes = [2, 384], strides = [1, 1]} : vector<2x512xf32> to vector<2x384xf32>
    %99 = arith.negf %98 : vector<2x384xf32>
    %100 = math.exp %99 : vector<2x384xf32>
    %cst_35 = arith.constant 1.000000e+00 : f32
    %101 = vector.broadcast %cst_35 : f32 to vector<2x384xf32>
    %102 = arith.addf %101, %100 : vector<2x384xf32>
    %103 = arith.divf %101, %102 : vector<2x384xf32>
    %104 = vector.extract_strided_slice %103 {offsets = [0, 0], sizes = [2, 128], strides = [1, 1]} : vector<2x384xf32> to vector<2x128xf32>
    %105 = vector.extract_strided_slice %103 {offsets = [0, 128], sizes = [2, 128], strides = [1, 1]} : vector<2x384xf32> to vector<2x128xf32>
    %106 = vector.extract_strided_slice %103 {offsets = [0, 256], sizes = [2, 128], strides = [1, 1]} : vector<2x384xf32> to vector<2x128xf32>
    %107 = vector.extract_strided_slice %97 {offsets = [0, 384], sizes = [2, 128], strides = [1, 1]} : vector<2x512xf32> to vector<2x128xf32>
    %108 = math.tanh %107 : vector<2x128xf32>
    %109 = arith.mulf %105, %93 : vector<2x128xf32>
    %110 = arith.mulf %104, %108 : vector<2x128xf32>
    %111 = arith.addf %109, %110 : vector<2x128xf32>
    %112 = math.tanh %111 : vector<2x128xf32>
    %113 = arith.mulf %106, %112 : vector<2x128xf32>
    %cst_36 = arith.constant dense<0.000000e+00> : vector<2x512xf32>
    %114 = tpu.matmul %113, %60, %cst_36 {dimension_numbers = #tpu.dot_dimension_numbers<[1], [0], [0], [1], [0, 0, 1, 1], [], []>} : vector<2x128xf32>, vector<128x512xf32>, vector<2x512xf32> -> vector<2x512xf32>
    %115 = arith.addf %50, %114 : vector<2x512xf32>
    %116 = vector.extract_strided_slice %115 {offsets = [0, 0], sizes = [2, 384], strides = [1, 1]} : vector<2x512xf32> to vector<2x384xf32>
    %117 = arith.negf %116 : vector<2x384xf32>
    %118 = math.exp %117 : vector<2x384xf32>
    %cst_37 = arith.constant 1.000000e+00 : f32
    %119 = vector.broadcast %cst_37 : f32 to vector<2x384xf32>
    %120 = arith.addf %119, %118 : vector<2x384xf32>
    %121 = arith.divf %119, %120 : vector<2x384xf32>
    %122 = vector.extract_strided_slice %121 {offsets = [0, 0], sizes = [2, 128], strides = [1, 1]} : vector<2x384xf32> to vector<2x128xf32>
    %123 = vector.extract_strided_slice %121 {offsets = [0, 128], sizes = [2, 128], strides = [1, 1]} : vector<2x384xf32> to vector<2x128xf32>
    %124 = vector.extract_strided_slice %121 {offsets = [0, 256], sizes = [2, 128], strides = [1, 1]} : vector<2x384xf32> to vector<2x128xf32>
    %125 = vector.extract_strided_slice %115 {offsets = [0, 384], sizes = [2, 128], strides = [1, 1]} : vector<2x512xf32> to vector<2x128xf32>
    %126 = math.tanh %125 : vector<2x128xf32>
    %127 = arith.mulf %123, %111 : vector<2x128xf32>
    %128 = arith.mulf %122, %126 : vector<2x128xf32>
    %129 = arith.addf %127, %128 : vector<2x128xf32>
    %130 = math.tanh %129 : vector<2x128xf32>
    %131 = arith.mulf %124, %130 : vector<2x128xf32>
    %cst_38 = arith.constant dense<0.000000e+00> : vector<2x512xf32>
    %132 = tpu.matmul %131, %60, %cst_38 {dimension_numbers = #tpu.dot_dimension_numbers<[1], [0], [0], [1], [0, 0, 1, 1], [], []>} : vector<2x128xf32>, vector<128x512xf32>, vector<2x512xf32> -> vector<2x512xf32>
    %133 = arith.addf %53, %132 : vector<2x512xf32>
    %134 = vector.extract_strided_slice %133 {offsets = [0, 0], sizes = [2, 384], strides = [1, 1]} : vector<2x512xf32> to vector<2x384xf32>
    %135 = arith.negf %134 : vector<2x384xf32>
    %136 = math.exp %135 : vector<2x384xf32>
    %cst_39 = arith.constant 1.000000e+00 : f32
    %137 = vector.broadcast %cst_39 : f32 to vector<2x384xf32>
    %138 = arith.addf %137, %136 : vector<2x384xf32>
    %139 = arith.divf %137, %138 : vector<2x384xf32>
    %140 = vector.extract_strided_slice %139 {offsets = [0, 0], sizes = [2, 128], strides = [1, 1]} : vector<2x384xf32> to vector<2x128xf32>
    %141 = vector.extract_strided_slice %139 {offsets = [0, 128], sizes = [2, 128], strides = [1, 1]} : vector<2x384xf32> to vector<2x128xf32>
    %142 = vector.extract_strided_slice %139 {offsets = [0, 256], sizes = [2, 128], strides = [1, 1]} : vector<2x384xf32> to vector<2x128xf32>
    %143 = vector.extract_strided_slice %133 {offsets = [0, 384], sizes = [2, 128], strides = [1, 1]} : vector<2x512xf32> to vector<2x128xf32>
    %144 = math.tanh %143 : vector<2x128xf32>
    %145 = arith.mulf %141, %129 : vector<2x128xf32>
    %146 = arith.mulf %140, %144 : vector<2x128xf32>
    %147 = arith.addf %145, %146 : vector<2x128xf32>
    %148 = math.tanh %147 : vector<2x128xf32>
    %149 = arith.mulf %142, %148 : vector<2x128xf32>
    %cst_40 = arith.constant dense<0.000000e+00> : vector<2x512xf32>
    %150 = tpu.matmul %149, %60, %cst_40 {dimension_numbers = #tpu.dot_dimension_numbers<[1], [0], [0], [1], [0, 0, 1, 1], [], []>} : vector<2x128xf32>, vector<128x512xf32>, vector<2x512xf32> -> vector<2x512xf32>
    %151 = arith.addf %56, %150 : vector<2x512xf32>
    %152 = vector.extract_strided_slice %151 {offsets = [0, 0], sizes = [2, 384], strides = [1, 1]} : vector<2x512xf32> to vector<2x384xf32>
    %153 = arith.negf %152 : vector<2x384xf32>
    %154 = math.exp %153 : vector<2x384xf32>
    %cst_41 = arith.constant 1.000000e+00 : f32
    %155 = vector.broadcast %cst_41 : f32 to vector<2x384xf32>
    %156 = arith.addf %155, %154 : vector<2x384xf32>
    %157 = arith.divf %155, %156 : vector<2x384xf32>
    %158 = vector.extract_strided_slice %157 {offsets = [0, 0], sizes = [2, 128], strides = [1, 1]} : vector<2x384xf32> to vector<2x128xf32>
    %159 = vector.extract_strided_slice %157 {offsets = [0, 128], sizes = [2, 128], strides = [1, 1]} : vector<2x384xf32> to vector<2x128xf32>
    %160 = vector.extract_strided_slice %157 {offsets = [0, 256], sizes = [2, 128], strides = [1, 1]} : vector<2x384xf32> to vector<2x128xf32>
    %161 = vector.extract_strided_slice %151 {offsets = [0, 384], sizes = [2, 128], strides = [1, 1]} : vector<2x512xf32> to vector<2x128xf32>
    %162 = math.tanh %161 : vector<2x128xf32>
    %163 = arith.mulf %159, %147 : vector<2x128xf32>
    %164 = arith.mulf %158, %162 : vector<2x128xf32>
    %165 = arith.addf %163, %164 : vector<2x128xf32>
    %166 = math.tanh %165 : vector<2x128xf32>
    %167 = arith.mulf %160, %166 : vector<2x128xf32>
    %cst_42 = arith.constant 0.000000e+00 : f32
    %168 = vector.broadcast %cst_42 : f32 to vector<2x128xf32>
    %169 = vector.extract_strided_slice %59 {offsets = [0, 0], sizes = [2, 384], strides = [1, 1]} : vector<2x512xf32> to vector<2x384xf32>
    %170 = arith.negf %169 : vector<2x384xf32>
    %171 = math.exp %170 : vector<2x384xf32>
    %cst_43 = arith.constant 1.000000e+00 : f32
    %172 = vector.broadcast %cst_43 : f32 to vector<2x384xf32>
    %173 = arith.addf %172, %171 : vector<2x384xf32>
    %174 = arith.divf %172, %173 : vector<2x384xf32>
    %175 = vector.extract_strided_slice %174 {offsets = [0, 0], sizes = [2, 128], strides = [1, 1]} : vector<2x384xf32> to vector<2x128xf32>
    %176 = vector.extract_strided_slice %174 {offsets = [0, 128], sizes = [2, 128], strides = [1, 1]} : vector<2x384xf32> to vector<2x128xf32>
    %177 = vector.extract_strided_slice %174 {offsets = [0, 256], sizes = [2, 128], strides = [1, 1]} : vector<2x384xf32> to vector<2x128xf32>
    %178 = vector.extract_strided_slice %59 {offsets = [0, 384], sizes = [2, 128], strides = [1, 1]} : vector<2x512xf32> to vector<2x128xf32>
    %179 = math.tanh %178 : vector<2x128xf32>
    %180 = arith.mulf %176, %168 : vector<2x128xf32>
    %181 = arith.mulf %175, %179 : vector<2x128xf32>
    %182 = arith.addf %180, %181 : vector<2x128xf32>
    %183 = math.tanh %182 : vector<2x128xf32>
    %184 = arith.mulf %177, %183 : vector<2x128xf32>
    %185 = tpu.concatenate %167, %184 in 1 : vector<2x128xf32>, vector<2x128xf32> -> vector<2x256xf32>
    %c0_44 = arith.constant 0 : index
    %c0_45 = arith.constant 0 : index
    %186 = vector.load %arg4[%c0_44, %c0_45] : memref<256x128xf32, #tpu.memory_space<vmem>>, vector<256x128xf32>
    %cst_46 = arith.constant dense<0.000000e+00> : vector<2x128xf32>
    %187 = tpu.matmul %185, %186, %cst_46 {dimension_numbers = #tpu.dot_dimension_numbers<[1], [0], [0], [1], [0, 0, 1, 1], [], []>} : vector<2x256xf32>, vector<256x128xf32>, vector<2x128xf32> -> vector<2x128xf32>
    %188 = vector.broadcast %2 : vector<1x128xf32> to vector<2x128xf32>
    %189 = arith.addf %187, %188 : vector<2x128xf32>
    %190 = vector.shape_cast %189 : vector<2x128xf32> to vector<2x1x128xf32>
    %c0_47 = arith.constant 0 : index
    %c0_48 = arith.constant 0 : index
    %c0_49 = arith.constant 0 : index
    %191 = vector.load %arg6[%c0_47, %c0_48, %c0_49] : memref<2x1x128xf32, #tpu.memory_space<vmem>>, vector<2x1x128xf32>
    tpu.vector_store %arg6[%c0_47, %c0_48, %c0_49], %190 {strides = array<i32>} : memref<2x1x128xf32, #tpu.memory_space<vmem>>, vector<2x1x128xf32>,
    return
  }
  func.func @transform_0(%arg0: i32) -> (i32, i32, i32) {
    %c0_i32 = arith.constant 0 : i32
    %c0_i32_0 = arith.constant 0 : i32
    %c0_i32_1 = arith.constant 0 : i32
    return %arg0, %c0_i32, %c0_i32_0 : i32, i32, i32
  }
  func.func @transform_1(%arg0: i32) -> (i32, i32, i32) {
    %c0_i32 = arith.constant 0 : i32
    %c0_i32_0 = arith.constant 0 : i32
    %c0_i32_1 = arith.constant 0 : i32
    %c0_i32_2 = arith.constant 0 : i32
    return %c0_i32, %c0_i32_0, %c0_i32_1 : i32, i32, i32
  }
  func.func @transform_2(%arg0: i32) -> (i32, i32) {
    %c0_i32 = arith.constant 0 : i32
    %c0_i32_0 = arith.constant 0 : i32
    %c0_i32_1 = arith.constant 0 : i32
    return %c0_i32, %c0_i32_0 : i32, i32
  }
  func.func @transform_3(%arg0: i32) -> (i32, i32) {
    %c0_i32 = arith.constant 0 : i32
    %c0_i32_0 = arith.constant 0 : i32
    %c0_i32_1 = arith.constant 0 : i32
    return %c0_i32, %c0_i32_0 : i32, i32
  }
  func.func @transform_4(%arg0: i32) -> (i32, i32) {
    %c0_i32 = arith.constant 0 : i32
    %c0_i32_0 = arith.constant 0 : i32
    %c0_i32_1 = arith.constant 0 : i32
    return %c0_i32, %c0_i32_0 : i32, i32
  }
  func.func @transform_5(%arg0: i32) -> (i32, i32, i32) {
    %c0_i32 = arith.constant 0 : i32
    %c0_i32_0 = arith.constant 0 : i32
    %c0_i32_1 = arith.constant 0 : i32
    return %arg0, %c0_i32, %c0_i32_0 : i32, i32, i32
  }
}

</mosaic_0001>

<llo_original>
// kernel: rcnn_forward.1
$region0: #{rcnn_forward.1}
  #allocation0 [shape = 'u32[]', space=smem, size = 0x4, offset = 0x4, fixed_abs, tag = 'smem constant byte address 0x4 - core index']
  #allocation1 [shape = 'u32[72,128]{1,0:T(1,128)}', space=vmem, size = 0x9000, scoped, tag = 'internal scratch']
  %s0 = inlined_call_operand.hbm [shape: f32[2,8,32], index: 0, kind: input, shape index: {}]
  %s1 = inlined_call_operand.hbm [shape: f32[3,32,1024], index: 1, kind: input, shape index: {}]
  %s2 = inlined_call_operand.hbm [shape: f32[128,512], index: 2, kind: input, shape index: {}]
  %s3 = inlined_call_operand.hbm [shape: f32[256,128], index: 3, kind: input, shape index: {}]
  %s4 = inlined_call_operand.hbm [shape: f32[1,1152], index: 4, kind: input, shape index: {}]
  %s5 = inlined_call_operand.hbm [shape: f32[2,1,128], index: 5, kind: output, shape index: {}]
  %s6 = sld [smem:[#allocation0]]
  $region50: #{rcnn_forward.1} parent=0
    _
  %s8 = ssub.s32 1, %s6
  %s9 = scalar_select 0, %s8, %s6
  $region1: #{rcnn_forward.1} parent=0
    #allocation2 [shape = 'u8[8192]{0}', space=vmem, size = 0x2000, scoped, tag = 'input window, operand 0, single buffered']
    #allocation3 [shape = 's32[1]{0}', space=sflag, size = 0x4, scoped, tag = 'scoped memory for rcnn_forward.1']
    #allocation4 [shape = 's32[1]{0}', space=sflag, size = 0x4, scoped, tag = 'scoped memory for rcnn_forward.1']
    #allocation5 [shape = 'u8[393216]{0}', space=vmem, size = 0x60000, scoped, tag = 'input window, operand 1, single buffered']
    #allocation6 [shape = 's32[1]{0}', space=sflag, size = 0x4, scoped, tag = 'scoped memory for rcnn_forward.1']
    #allocation7 [shape = 'u8[262144]{0}', space=vmem, size = 0x40000, scoped, tag = 'input window, operand 2, single buffered']
    #allocation8 [shape = 'u8[131072]{0}', space=vmem, size = 0x20000, scoped, tag = 'input window, operand 3, single buffered']
    #allocation9 [shape = 's32[1]{0}', space=sflag, size = 0x4, scoped, tag = 'scoped memory for rcnn_forward.1']
    #allocation10 [shape = 'u8[4608]{0}', space=vmem, size = 0x1400, scoped, tag = 'input window, operand 4, single buffered']
    #allocation11 [shape = 'u8[1024]{0}', space=vmem, size = 0x400, scoped, tag = 'output window, operand 0, single buffered']
    %10 = vsyncpa [#allocation3], 0
    %11 = vsyncpa [#allocation6], 0
    %12 = vsyncpa [#allocation9], 0
    %13 = vsyncpa [#allocation4], 0
    // Predicated region
    $region2: #{rcnn_forward.1} parent=1 // pred_check
      _
    $region3: #{rcnn_forward.1} parent=1 // pred_check_branch
      %15 = sbr.rel (0) target = $region5
    $region4: #{rcnn_forward.1} parent=1 // pred_region
      %17 = vsyncadd [#allocation3], 0
      %s18 = sshll.u32 %s0, 4
      %s19 = int_to_ptr.hbm [resolvable:$true] %s18
      %s20 = sshll.u32 [#allocation2], 4
      %s21 = int_to_ptr.vmem [resolvable:$true] %s20
      %26 = dma.hbm_to_vmem [thread:$0]  %s19, 256, %s21, [#allocation3], 128, 128, 8
    $region5: #{rcnn_forward.1} parent=1 // pred_fallthru
      _
    // Predicated region
    $region6: #{rcnn_forward.1} parent=1 // pred_check
      _
    $region7: #{rcnn_forward.1} parent=1 // pred_check_branch
      %28 = sbr.rel (0) target = $region9
    $region8: #{rcnn_forward.1} parent=1 // pred_region
      %30 = vsyncadd [#allocation6], 0
      %s31 = sshll.u32 %s1, 4
      %s32 = int_to_ptr.hbm [resolvable:$true] %s31
      %s33 = sshll.u32 [#allocation5], 4
      %s34 = int_to_ptr.vmem [resolvable:$true] %s33
      %39 = dma.hbm_to_vmem [thread:$0]  %s32, 12288, %s34, [#allocation6], 1024, 1024, 64
    $region9: #{rcnn_forward.1} parent=1 // pred_fallthru
      _
    // Predicated region
    $region10: #{rcnn_forward.1} parent=1 // pred_check
      _
    $region11: #{rcnn_forward.1} parent=1 // pred_check_branch
      %41 = sbr.rel (0) target = $region13
    $region12: #{rcnn_forward.1} parent=1 // pred_region
      %43 = vsyncadd [#allocation6], 0
      %s44 = sshll.u32 %s2, 4
      %s45 = int_to_ptr.hbm [resolvable:$true] %s44
      %s46 = sshll.u32 [#allocation7], 4
      %s47 = int_to_ptr.vmem [resolvable:$true] %s46
      %52 = dma.hbm_to_vmem [thread:$0]  %s45, 8192, %s47, [#allocation6], 512, 512, 32
    $region13: #{rcnn_forward.1} parent=1 // pred_fallthru
      _
    // Predicated region
    $region14: #{rcnn_forward.1} parent=1 // pred_check
      _
    $region15: #{rcnn_forward.1} parent=1 // pred_check_branch
      %54 = sbr.rel (0) target = $region17
    $region16: #{rcnn_forward.1} parent=1 // pred_region
      %56 = vsyncadd [#allocation9], 0
      %s57 = sshll.u32 %s3, 4
      %s58 = int_to_ptr.hbm [resolvable:$true] %s57
      %s59 = sshll.u32 [#allocation8], 4
      %s60 = int_to_ptr.vmem [resolvable:$true] %s59
      %65 = dma.hbm_to_vmem [thread:$0]  %s58, 4096, %s60, [#allocation9], 128, 128, 8
    $region17: #{rcnn_forward.1} parent=1 // pred_fallthru
      _
    // Predicated region
    $region18: #{rcnn_forward.1} parent=1 // pred_check
      _
    $region19: #{rcnn_forward.1} parent=1 // pred_check_branch
      %67 = sbr.rel (0) target = $region21
    $region20: #{rcnn_forward.1} parent=1 // pred_region
      %69 = vsyncadd [#allocation9], 0
      %s71 = sshll.u32 %s4, 4
      %s72 = int_to_ptr.hbm [resolvable:$true] %s71
      %s73 = sshll.u32 [#allocation10], 4
      %s74 = int_to_ptr.vmem [resolvable:$true] %s73
      %76 = dma.hbm_to_vmem [thread:$0]  %s72, 144, %s74, [#allocation9]
    $region21: #{rcnn_forward.1} parent=1 // pred_fallthru
      _
    // Predicated region
    $region22: #{rcnn_forward.1} parent=1 // pred_check
      _
    $region23: #{rcnn_forward.1} parent=1 // pred_check_branch
      %78 = sbr.rel (0) target = $region25
    $region24: #{rcnn_forward.1} parent=1 // pred_region
      %80 = dma.done [#allocation3], 256
    $region25: #{rcnn_forward.1} parent=1 // pred_fallthru
      _
    // Predicated region
    $region26: #{rcnn_forward.1} parent=1 // pred_check
      _
    $region27: #{rcnn_forward.1} parent=1 // pred_check_branch
      %82 = sbr.rel (0) target = $region29
    $region28: #{rcnn_forward.1} parent=1 // pred_region
      %84 = dma.done [#allocation6], 12288
    $region29: #{rcnn_forward.1} parent=1 // pred_fallthru
      _
    // Predicated region
    $region30: #{rcnn_forward.1} parent=1 // pred_check
      _
    $region31: #{rcnn_forward.1} parent=1 // pred_check_branch
      %86 = sbr.rel (0) target = $region33
    $region32: #{rcnn_forward.1} parent=1 // pred_region
      %88 = dma.done [#allocation6], 8192
    $region33: #{rcnn_forward.1} parent=1 // pred_fallthru
      _
    // Predicated region
    $region34: #{rcnn_forward.1} parent=1 // pred_check
      _
    $region35: #{rcnn_forward.1} parent=1 // pred_check_branch
      %90 = sbr.rel (0) target = $region37
    $region36: #{rcnn_forward.1} parent=1 // pred_region
      %92 = dma.done [#allocation9], 4096
    $region37: #{rcnn_forward.1} parent=1 // pred_fallthru
      _
    // Predicated region
    $region38: #{rcnn_forward.1} parent=1 // pred_check
      _
    $region39: #{rcnn_forward.1} parent=1 // pred_check_branch
      %94 = sbr.rel (0) target = $region41
    $region40: #{rcnn_forward.1} parent=1 // pred_region
      %96 = dma.done [#allocation9], 144
    $region41: #{rcnn_forward.1} parent=1 // pred_fallthru
      _
    %v97 = vld [vmem:[#allocation10] sm:$0xff]
    %v98 = vld [vmem:[#allocation10 + $0x8] sm:$0x1]
    %v100 = vperm.slane %v97, 0
    %v101 = vperm.slane %v97, 1
    %v102 = vperm.slane %v97, 2
    %v103 = vperm.slane %v97, 3
    %v104 = vperm.slane %v97, 4
    %v105 = vperm.slane %v97, 5
    %v106 = vperm.slane %v97, 6
    %v107 = vperm.slane %v97, 7
    %v116 = vld [vmem:[#allocation2] sm:$0xff]
    %v117 = vld [vmem:[#allocation5] sm:$0xff]
    %v118 = vld [vmem:[#allocation5 + $0x8] sm:$0xff]
    %v119 = vld [vmem:[#allocation5 + $0x10] sm:$0xff]
    %v120 = vld [vmem:[#allocation5 + $0x18] sm:$0xff]
    %v121 = vld [vmem:[#allocation5 + $0x20] sm:$0xff]
    %v122 = vld [vmem:[#allocation5 + $0x28] sm:$0xff]
    %v123 = vld [vmem:[#allocation5 + $0x30] sm:$0xff]
    %v124 = vld [vmem:[#allocation5 + $0x38] sm:$0xff]
    %v125 = vld [vmem:[#allocation5 + $0x40] sm:$0xff]
    %v126 = vld [vmem:[#allocation5 + $0x48] sm:$0xff]
    %v127 = vld [vmem:[#allocation5 + $0x50] sm:$0xff]
    %v128 = vld [vmem:[#allocation5 + $0x58] sm:$0xff]
    %v129 = vld [vmem:[#allocation5 + $0x60] sm:$0xff]
    %v130 = vld [vmem:[#allocation5 + $0x68] sm:$0xff]
    %v131 = vld [vmem:[#allocation5 + $0x70] sm:$0xff]
    %v132 = vld [vmem:[#allocation5 + $0x78] sm:$0xff]
    %v133 = vld [vmem:[#allocation5 + $0x80] sm:$0xff]
    %v134 = vld [vmem:[#allocation5 + $0x88] sm:$0xff]
    %v135 = vld [vmem:[#allocation5 + $0x90] sm:$0xff]
    %v136 = vld [vmem:[#allocation5 + $0x98] sm:$0xff]
    %v137 = vld [vmem:[#allocation5 + $0xa0] sm:$0xff]
    %v138 = vld [vmem:[#allocation5 + $0xa8] sm:$0xff]
    %v139 = vld [vmem:[#allocation5 + $0xb0] sm:$0xff]
    %v140 = vld [vmem:[#allocation5 + $0xb8] sm:$0xff]
    %v141 = vld [vmem:[#allocation5 + $0xc0] sm:$0xff]
    %v142 = vld [vmem:[#allocation5 + $0xc8] sm:$0xff]
    %v143 = vld [vmem:[#allocation5 + $0xd0] sm:$0xff]
    %v144 = vld [vmem:[#allocation5 + $0xd8] sm:$0xff]
    %v145 = vld [vmem:[#allocation5 + $0xe0] sm:$0xff]
    %v146 = vld [vmem:[#allocation5 + $0xe8] sm:$0xff]
    %v147 = vld [vmem:[#allocation5 + $0xf0] sm:$0xff]
    %v148 = vld [vmem:[#allocation5 + $0xf8] sm:$0xff]
    %vm149 = vcmask 261120
    %v151 = vsel %vm149, %v116, 0
    %153 = vmatpush.msra.mxu0 0.0
    %154 = vmatpush.msra.mxu0 0.0
    %155 = vmatpush.msra.mxu0 0.0
    %156 = vmatpush.msra.mxu0 0.0
    %157 = vmatpush.msra.mxu0 0.0
    %158 = vmatpush.msra.mxu0 0.0
    %159 = vmatpush.msra.mxu0 0.0
    %160 = vmatpush.msra.mxu0 0.0
    %161 = vmatpush.msra.mxu0 0.0
    %162 = vmatpush.msra.mxu0 0.0
    %163 = vmatpush.msra.mxu0 0.0
    %164 = vmatpush.msra.mxu0 0.0
    %165 = vmatpush.msra.mxu0 %v141
    %166 = vmatpush.msra.mxu0 %v133
    %167 = vmatpush.msra.mxu0 %v125
    %168 = vmatpush.msra.mxu0 %v117
    %169 = vmatmul.f32.gmra.mxu0 %v151
    %v170 = vpop.f32.mrf.mxu0
    %v171 = vadd.f32 0.0, %v170
    %172 = vdwg.mxu0
    %173 = vmatpush.msra.mxu0 0.0
    %174 = vmatpush.msra.mxu0 0.0
    %175 = vmatpush.msra.mxu0 0.0
    %176 = vmatpush.msra.mxu0 0.0
    %177 = vmatpush.msra.mxu0 0.0
    %178 = vmatpush.msra.mxu0 0.0
    %179 = vmatpush.msra.mxu0 0.0
    %180 = vmatpush.msra.mxu0 0.0
    %181 = vmatpush.msra.mxu0 0.0
    %182 = vmatpush.msra.mxu0 0.0
    %183 = vmatpush.msra.mxu0 0.0
    %184 = vmatpush.msra.mxu0 0.0
    %185 = vmatpush.msra.mxu0 %v142
    %186 = vmatpush.msra.mxu0 %v134
    %187 = vmatpush.msra.mxu0 %v126
    %188 = vmatpush.msra.mxu0 %v118
    %189 = vmatmul.f32.gmra.mxu0 %v151
    %v190 = vpop.f32.mrf.mxu0
    %v191 = vadd.f32 0.0, %v190
    %192 = vdwg.mxu0
    %193 = vmatpush.msra.mxu0 0.0
    %194 = vmatpush.msra.mxu0 0.0
    %195 = vmatpush.msra.mxu0 0.0
    %196 = vmatpush.msra.mxu0 0.0
    %197 = vmatpush.msra.mxu0 0.0
    %198 = vmatpush.msra.mxu0 0.0
    %199 = vmatpush.msra.mxu0 0.0
    %200 = vmatpush.msra.mxu0 0.0
    %201 = vmatpush.msra.mxu0 0.0
    %202 = vmatpush.msra.mxu0 0.0
    %203 = vmatpush.msra.mxu0 0.0
    %204 = vmatpush.msra.mxu0 0.0
    %205 = vmatpush.msra.mxu0 %v143
    %206 = vmatpush.msra.mxu0 %v135
    %207 = vmatpush.msra.mxu0 %v127
    %208 = vmatpush.msra.mxu0 %v119
    %209 = vmatmul.f32.gmra.mxu0 %v151
    %v210 = vpop.f32.mrf.mxu0
    %v211 = vadd.f32 0.0, %v210
    %212 = vdwg.mxu0
    %213 = vmatpush.msra.mxu0 0.0
    %214 = vmatpush.msra.mxu0 0.0
    %215 = vmatpush.msra.mxu0 0.0
    %216 = vmatpush.msra.mxu0 0.0
    %217 = vmatpush.msra.mxu0 0.0
    %218 = vmatpush.msra.mxu0 0.0
    %219 = vmatpush.msra.mxu0 0.0
    %220 = vmatpush.msra.mxu0 0.0
    %221 = vmatpush.msra.mxu0 0.0
    %222 = vmatpush.msra.mxu0 0.0
    %223 = vmatpush.msra.mxu0 0.0
    %224 = vmatpush.msra.mxu0 0.0
    %225 = vmatpush.msra.mxu0 %v144
    %226 = vmatpush.msra.mxu0 %v136
    %227 = vmatpush.msra.mxu0 %v128
    %228 = vmatpush.msra.mxu0 %v120
    %229 = vmatmul.f32.gmra.mxu0 %v151
    %v230 = vpop.f32.mrf.mxu0
    %v231 = vadd.f32 0.0, %v230
    %232 = vdwg.mxu0
    %233 = vmatpush.msra.mxu0 0.0
    %234 = vmatpush.msra.mxu0 0.0
    %235 = vmatpush.msra.mxu0 0.0
    %236 = vmatpush.msra.mxu0 0.0
    %237 = vmatpush.msra.mxu0 0.0
    %238 = vmatpush.msra.mxu0 0.0
    %239 = vmatpush.msra.mxu0 0.0
    %240 = vmatpush.msra.mxu0 0.0
    %241 = vmatpush.msra.mxu0 0.0
    %242 = vmatpush.msra.mxu0 0.0
    %243 = vmatpush.msra.mxu0 0.0
    %244 = vmatpush.msra.mxu0 0.0
    %245 = vmatpush.msra.mxu0 %v145
    %246 = vmatpush.msra.mxu0 %v137
    %247 = vmatpush.msra.mxu0 %v129
    %248 = vmatpush.msra.mxu0 %v121
    %249 = vmatmul.f32.gmra.mxu0 %v151
    %v250 = vpop.f32.mrf.mxu0
    %v251 = vadd.f32 0.0, %v250
    %252 = vdwg.mxu0
    %253 = vmatpush.msra.mxu0 0.0
    %254 = vmatpush.msra.mxu0 0.0
    %255 = vmatpush.msra.mxu0 0.0
    %256 = vmatpush.msra.mxu0 0.0
    %257 = vmatpush.msra.mxu0 0.0
    %258 = vmatpush.msra.mxu0 0.0
    %259 = vmatpush.msra.mxu0 0.0
    %260 = vmatpush.msra.mxu0 0.0
    %261 = vmatpush.msra.mxu0 0.0
    %262 = vmatpush.msra.mxu0 0.0
    %263 = vmatpush.msra.mxu0 0.0
    %264 = vmatpush.msra.mxu0 0.0
    %265 = vmatpush.msra.mxu0 %v146
    %266 = vmatpush.msra.mxu0 %v138
    %267 = vmatpush.msra.mxu0 %v130
    %268 = vmatpush.msra.mxu0 %v122
    %269 = vmatmul.f32.gmra.mxu0 %v151
    %v270 = vpop.f32.mrf.mxu0
    %v271 = vadd.f32 0.0, %v270
    %272 = vdwg.mxu0
    %273 = vmatpush.msra.mxu0 0.0
    %274 = vmatpush.msra.mxu0 0.0
    %275 = vmatpush.msra.mxu0 0.0
    %276 = vmatpush.msra.mxu0 0.0
    %277 = vmatpush.msra.mxu0 0.0
    %278 = vmatpush.msra.mxu0 0.0
    %279 = vmatpush.msra.mxu0 0.0
    %280 = vmatpush.msra.mxu0 0.0
    %281 = vmatpush.msra.mxu0 0.0
    %282 = vmatpush.msra.mxu0 0.0
    %283 = vmatpush.msra.mxu0 0.0
    %284 = vmatpush.msra.mxu0 0.0
    %285 = vmatpush.msra.mxu0 %v147
    %286 = vmatpush.msra.mxu0 %v139
    %287 = vmatpush.msra.mxu0 %v131
    %288 = vmatpush.msra.mxu0 %v123
    %289 = vmatmul.f32.gmra.mxu0 %v151
    %v290 = vpop.f32.mrf.mxu0
    %v291 = vadd.f32 0.0, %v290
    %292 = vdwg.mxu0
    %293 = vmatpush.msra.mxu0 0.0
    %294 = vmatpush.msra.mxu0 0.0
    %295 = vmatpush.msra.mxu0 0.0
    %296 = vmatpush.msra.mxu0 0.0
    %297 = vmatpush.msra.mxu0 0.0
    %298 = vmatpush.msra.mxu0 0.0
    %299 = vmatpush.msra.mxu0 0.0
    %300 = vmatpush.msra.mxu0 0.0
    %301 = vmatpush.msra.mxu0 0.0
    %302 = vmatpush.msra.mxu0 0.0
    %303 = vmatpush.msra.mxu0 0.0
    %304 = vmatpush.msra.mxu0 0.0
    %305 = vmatpush.msra.mxu0 %v148
    %306 = vmatpush.msra.mxu0 %v140
    %307 = vmatpush.msra.mxu0 %v132
    %308 = vmatpush.msra.mxu0 %v124
    %309 = vmatmul.f32.gmra.mxu0 %v151
    %v310 = vpop.f32.mrf.mxu0
    %v311 = vadd.f32 0.0, %v310
    %312 = vdwg.mxu0
    %v313 = vadd.f32 %v100, %v171
    %v314 = vadd.f32 %v101, %v191
    %v315 = vadd.f32 %v102, %v211
    %v316 = vadd.f32 %v103, %v231
    %v317 = vadd.f32 %v104, %v251
    %v318 = vadd.f32 %v105, %v271
    %v319 = vadd.f32 %v106, %v291
    %v320 = vadd.f32 %v107, %v311
    %s321 = scalar_lea.vmem [#allocation5], 256
    %v322 = vld [vmem:[%s321] sm:$0xff]
    %v323 = vld [vmem:[%s321 + $0x8] sm:$0xff]
    %v324 = vld [vmem:[%s321 + $0x10] sm:$0xff]
    %v325 = vld [vmem:[%s321 + $0x18] sm:$0xff]
    %v326 = vld [vmem:[%s321 + $0x20] sm:$0xff]
    %v327 = vld [vmem:[%s321 + $0x28] sm:$0xff]
    %v328 = vld [vmem:[%s321 + $0x30] sm:$0xff]
    %v329 = vld [vmem:[%s321 + $0x38] sm:$0xff]
    %v330 = vld [vmem:[%s321 + $0x40] sm:$0xff]
    %v331 = vld [vmem:[%s321 + $0x48] sm:$0xff]
    %v332 = vld [vmem:[%s321 + $0x50] sm:$0xff]
    %v333 = vld [vmem:[%s321 + $0x58] sm:$0xff]
    %v334 = vld [vmem:[%s321 + $0x60] sm:$0xff]
    %v335 = vld [vmem:[%s321 + $0x68] sm:$0xff]
    %v336 = vld [vmem:[%s321 + $0x70] sm:$0xff]
    %v337 = vld [vmem:[%s321 + $0x78] sm:$0xff]
    %v338 = vld [vmem:[%s321 + $0x80] sm:$0xff]
    %v339 = vld [vmem:[%s321 + $0x88] sm:$0xff]
    %v340 = vld [vmem:[%s321 + $0x90] sm:$0xff]
    %v341 = vld [vmem:[%s321 + $0x98] sm:$0xff]
    %v342 = vld [vmem:[%s321 + $0xa0] sm:$0xff]
    %v343 = vld [vmem:[%s321 + $0xa8] sm:$0xff]
    %v344 = vld [vmem:[%s321 + $0xb0] sm:$0xff]
    %v345 = vld [vmem:[%s321 + $0xb8] sm:$0xff]
    %v346 = vld [vmem:[%s321 + $0xc0] sm:$0xff]
    %v347 = vld [vmem:[%s321 + $0xc8] sm:$0xff]
    %v348 = vld [vmem:[%s321 + $0xd0] sm:$0xff]
    %v349 = vld [vmem:[%s321 + $0xd8] sm:$0xff]
    %v350 = vld [vmem:[%s321 + $0xe0] sm:$0xff]
    %v351 = vld [vmem:[%s321 + $0xe8] sm:$0xff]
    %v352 = vld [vmem:[%s321 + $0xf0] sm:$0xff]
    %v353 = vld [vmem:[%s321 + $0xf8] sm:$0xff]
    %v354 = vrot.slane %v116, 1
    %v355 = vsel %vm149, %v354, 0
    %357 = vmatpush.msra.mxu0 0.0
    %358 = vmatpush.msra.mxu0 0.0
    %359 = vmatpush.msra.mxu0 0.0
    %360 = vmatpush.msra.mxu0 0.0
    %361 = vmatpush.msra.mxu0 0.0
    %362 = vmatpush.msra.mxu0 0.0
    %363 = vmatpush.msra.mxu0 0.0
    %364 = vmatpush.msra.mxu0 0.0
    %365 = vmatpush.msra.mxu0 0.0
    %366 = vmatpush.msra.mxu0 0.0
    %367 = vmatpush.msra.mxu0 0.0
    %368 = vmatpush.msra.mxu0 0.0
    %369 = vmatpush.msra.mxu0 %v346
    %370 = vmatpush.msra.mxu0 %v338
    %371 = vmatpush.msra.mxu0 %v330
    %372 = vmatpush.msra.mxu0 %v322
    %373 = vmatmul.f32.gmra.mxu0 %v355
    %v374 = vpop.f32.mrf.mxu0
    %v375 = vadd.f32 0.0, %v374
    %376 = vdwg.mxu0
    %377 = vmatpush.msra.mxu0 0.0
    %378 = vmatpush.msra.mxu0 0.0
    %379 = vmatpush.msra.mxu0 0.0
    %380 = vmatpush.msra.mxu0 0.0
    %381 = vmatpush.msra.mxu0 0.0
    %382 = vmatpush.msra.mxu0 0.0
    %383 = vmatpush.msra.mxu0 0.0
    %384 = vmatpush.msra.mxu0 0.0
    %385 = vmatpush.msra.mxu0 0.0
    %386 = vmatpush.msra.mxu0 0.0
    %387 = vmatpush.msra.mxu0 0.0
    %388 = vmatpush.msra.mxu0 0.0
    %389 = vmatpush.msra.mxu0 %v347
    %390 = vmatpush.msra.mxu0 %v339
    %391 = vmatpush.msra.mxu0 %v331
    %392 = vmatpush.msra.mxu0 %v323
    %393 = vmatmul.f32.gmra.mxu0 %v355
    %v394 = vpop.f32.mrf.mxu0
    %v395 = vadd.f32 0.0, %v394
    %396 = vdwg.mxu0
    %397 = vmatpush.msra.mxu0 0.0
    %398 = vmatpush.msra.mxu0 0.0
    %399 = vmatpush.msra.mxu0 0.0
    %400 = vmatpush.msra.mxu0 0.0
    %401 = vmatpush.msra.mxu0 0.0
    %402 = vmatpush.msra.mxu0 0.0
    %403 = vmatpush.msra.mxu0 0.0
    %404 = vmatpush.msra.mxu0 0.0
    %405 = vmatpush.msra.mxu0 0.0
    %406 = vmatpush.msra.mxu0 0.0
    %407 = vmatpush.msra.mxu0 0.0
    %408 = vmatpush.msra.mxu0 0.0
    %409 = vmatpush.msra.mxu0 %v348
    %410 = vmatpush.msra.mxu0 %v340
    %411 = vmatpush.msra.mxu0 %v332
    %412 = vmatpush.msra.mxu0 %v324
    %413 = vmatmul.f32.gmra.mxu0 %v355
    %v414 = vpop.f32.mrf.mxu0
    %v415 = vadd.f32 0.0, %v414
    %416 = vdwg.mxu0
    %417 = vmatpush.msra.mxu0 0.0
    %418 = vmatpush.msra.mxu0 0.0
    %419 = vmatpush.msra.mxu0 0.0
    %420 = vmatpush.msra.mxu0 0.0
    %421 = vmatpush.msra.mxu0 0.0
    %422 = vmatpush.msra.mxu0 0.0
    %423 = vmatpush.msra.mxu0 0.0
    %424 = vmatpush.msra.mxu0 0.0
    %425 = vmatpush.msra.mxu0 0.0
    %426 = vmatpush.msra.mxu0 0.0
    %427 = vmatpush.msra.mxu0 0.0
    %428 = vmatpush.msra.mxu0 0.0
    %429 = vmatpush.msra.mxu0 %v349
    %430 = vmatpush.msra.mxu0 %v341
    %431 = vmatpush.msra.mxu0 %v333
    %432 = vmatpush.msra.mxu0 %v325
    %433 = vmatmul.f32.gmra.mxu0 %v355
    %v434 = vpop.f32.mrf.mxu0
    %v435 = vadd.f32 0.0, %v434
    %436 = vdwg.mxu0
    %437 = vmatpush.msra.mxu0 0.0
    %438 = vmatpush.msra.mxu0 0.0
    %439 = vmatpush.msra.mxu0 0.0
    %440 = vmatpush.msra.mxu0 0.0
    %441 = vmatpush.msra.mxu0 0.0
    %442 = vmatpush.msra.mxu0 0.0
    %443 = vmatpush.msra.mxu0 0.0
    %444 = vmatpush.msra.mxu0 0.0
    %445 = vmatpush.msra.mxu0 0.0
    %446 = vmatpush.msra.mxu0 0.0
    %447 = vmatpush.msra.mxu0 0.0
    %448 = vmatpush.msra.mxu0 0.0
    %449 = vmatpush.msra.mxu0 %v350
    %450 = vmatpush.msra.mxu0 %v342
    %451 = vmatpush.msra.mxu0 %v334
    %452 = vmatpush.msra.mxu0 %v326
    %453 = vmatmul.f32.gmra.mxu0 %v355
    %v454 = vpop.f32.mrf.mxu0
    %v455 = vadd.f32 0.0, %v454
    %456 = vdwg.mxu0
    %457 = vmatpush.msra.mxu0 0.0
    %458 = vmatpush.msra.mxu0 0.0
    %459 = vmatpush.msra.mxu0 0.0
    %460 = vmatpush.msra.mxu0 0.0
    %461 = vmatpush.msra.mxu0 0.0
    %462 = vmatpush.msra.mxu0 0.0
    %463 = vmatpush.msra.mxu0 0.0
    %464 = vmatpush.msra.mxu0 0.0
    %465 = vmatpush.msra.mxu0 0.0
    %466 = vmatpush.msra.mxu0 0.0
    %467 = vmatpush.msra.mxu0 0.0
    %468 = vmatpush.msra.mxu0 0.0
    %469 = vmatpush.msra.mxu0 %v351
    %470 = vmatpush.msra.mxu0 %v343
    %471 = vmatpush.msra.mxu0 %v335
    %472 = vmatpush.msra.mxu0 %v327
    %473 = vmatmul.f32.gmra.mxu0 %v355
    %v474 = vpop.f32.mrf.mxu0
    %v475 = vadd.f32 0.0, %v474
    %476 = vdwg.mxu0
    %477 = vmatpush.msra.mxu0 0.0
    %478 = vmatpush.msra.mxu0 0.0
    %479 = vmatpush.msra.mxu0 0.0
    %480 = vmatpush.msra.mxu0 0.0
    %481 = vmatpush.msra.mxu0 0.0
    %482 = vmatpush.msra.mxu0 0.0
    %483 = vmatpush.msra.mxu0 0.0
    %484 = vmatpush.msra.mxu0 0.0
    %485 = vmatpush.msra.mxu0 0.0
    %486 = vmatpush.msra.mxu0 0.0
    %487 = vmatpush.msra.mxu0 0.0
    %488 = vmatpush.msra.mxu0 0.0
    %489 = vmatpush.msra.mxu0 %v352
    %490 = vmatpush.msra.mxu0 %v344
    %491 = vmatpush.msra.mxu0 %v336
    %492 = vmatpush.msra.mxu0 %v328
    %493 = vmatmul.f32.gmra.mxu0 %v355
    %v494 = vpop.f32.mrf.mxu0
    %v495 = vadd.f32 0.0, %v494
    %496 = vdwg.mxu0
    %497 = vmatpush.msra.mxu0 0.0
    %498 = vmatpush.msra.mxu0 0.0
    %499 = vmatpush.msra.mxu0 0.0
    %500 = vmatpush.msra.mxu0 0.0
    %501 = vmatpush.msra.mxu0 0.0
    %502 = vmatpush.msra.mxu0 0.0
    %503 = vmatpush.msra.mxu0 0.0
    %504 = vmatpush.msra.mxu0 0.0
    %505 = vmatpush.msra.mxu0 0.0
    %506 = vmatpush.msra.mxu0 0.0
    %507 = vmatpush.msra.mxu0 0.0
    %508 = vmatpush.msra.mxu0 0.0
    %509 = vmatpush.msra.mxu0 %v353
    %510 = vmatpush.msra.mxu0 %v345
    %511 = vmatpush.msra.mxu0 %v337
    %512 = vmatpush.msra.mxu0 %v329
    %513 = vmatmul.f32.gmra.mxu0 %v355
    %v514 = vpop.f32.mrf.mxu0
    %v515 = vadd.f32 0.0, %v514
    %516 = vdwg.mxu0
    %v517 = vadd.f32 %v313, %v375
    %v518 = vadd.f32 %v314, %v395
    %v519 = vadd.f32 %v315, %v415
    %v520 = vadd.f32 %v316, %v435
    %v521 = vadd.f32 %v317, %v455
    %v522 = vadd.f32 %v318, %v475
    %v523 = vadd.f32 %v319, %v495
    %v524 = vadd.f32 %v320, %v515
    %s525 = scalar_lea.vmem [#allocation5], 512
    %v526 = vld [vmem:[%s525] sm:$0xff]
    %v527 = vld [vmem:[%s525 + $0x8] sm:$0xff]
    %v528 = vld [vmem:[%s525 + $0x10] sm:$0xff]
    %v529 = vld [vmem:[%s525 + $0x18] sm:$0xff]
    %v530 = vld [vmem:[%s525 + $0x20] sm:$0xff]
    %v531 = vld [vmem:[%s525 + $0x28] sm:$0xff]
    %v532 = vld [vmem:[%s525 + $0x30] sm:$0xff]
    %v533 = vld [vmem:[%s525 + $0x38] sm:$0xff]
    %v534 = vld [vmem:[%s525 + $0x40] sm:$0xff]
    %v535 = vld [vmem:[%s525 + $0x48] sm:$0xff]
    %v536 = vld [vmem:[%s525 + $0x50] sm:$0xff]
    %v537 = vld [vmem:[%s525 + $0x58] sm:$0xff]
    %v538 = vld [vmem:[%s525 + $0x60] sm:$0xff]
    %v539 = vld [vmem:[%s525 + $0x68] sm:$0xff]
    %v540 = vld [vmem:[%s525 + $0x70] sm:$0xff]
    %v541 = vld [vmem:[%s525 + $0x78] sm:$0xff]
    %v542 = vld [vmem:[%s525 + $0x80] sm:$0xff]
    %v543 = vld [vmem:[%s525 + $0x88] sm:$0xff]
    %v544 = vld [vmem:[%s525 + $0x90] sm:$0xff]
    %v545 = vld [vmem:[%s525 + $0x98] sm:$0xff]
    %v546 = vld [vmem:[%s525 + $0xa0] sm:$0xff]
    %v547 = vld [vmem:[%s525 + $0xa8] sm:$0xff]
    %v548 = vld [vmem:[%s525 + $0xb0] sm:$0xff]
    %v549 = vld [vmem:[%s525 + $0xb8] sm:$0xff]
    %v550 = vld [vmem:[%s525 + $0xc0] sm:$0xff]
    %v551 = vld [vmem:[%s525 + $0xc8] sm:$0xff]
    %v552 = vld [vmem:[%s525 + $0xd0] sm:$0xff]
    %v553 = vld [vmem:[%s525 + $0xd8] sm:$0xff]
    %v554 = vld [vmem:[%s525 + $0xe0] sm:$0xff]
    %v555 = vld [vmem:[%s525 + $0xe8] sm:$0xff]
    %v556 = vld [vmem:[%s525 + $0xf0] sm:$0xff]
    %v557 = vld [vmem:[%s525 + $0xf8] sm:$0xff]
    %v558 = vrot.slane %v116, 2
    %v559 = vsel %vm149, %v558, 0
    %561 = vmatpush.msra.mxu0 0.0
    %562 = vmatpush.msra.mxu0 0.0
    %563 = vmatpush.msra.mxu0 0.0
    %564 = vmatpush.msra.mxu0 0.0
    %565 = vmatpush.msra.mxu0 0.0
    %566 = vmatpush.msra.mxu0 0.0
    %567 = vmatpush.msra.mxu0 0.0
    %568 = vmatpush.msra.mxu0 0.0
    %569 = vmatpush.msra.mxu0 0.0
    %570 = vmatpush.msra.mxu0 0.0
    %571 = vmatpush.msra.mxu0 0.0
    %572 = vmatpush.msra.mxu0 0.0
    %573 = vmatpush.msra.mxu0 %v550
    %574 = vmatpush.msra.mxu0 %v542
    %575 = vmatpush.msra.mxu0 %v534
    %576 = vmatpush.msra.mxu0 %v526
    %577 = vmatmul.f32.gmra.mxu0 %v559
    %v578 = vpop.f32.mrf.mxu0
    %v579 = vadd.f32 0.0, %v578
    %580 = vdwg.mxu0
    %581 = vmatpush.msra.mxu0 0.0
    %582 = vmatpush.msra.mxu0 0.0
    %583 = vmatpush.msra.mxu0 0.0
    %584 = vmatpush.msra.mxu0 0.0
    %585 = vmatpush.msra.mxu0 0.0
    %586 = vmatpush.msra.mxu0 0.0
    %587 = vmatpush.msra.mxu0 0.0
    %588 = vmatpush.msra.mxu0 0.0
    %589 = vmatpush.msra.mxu0 0.0
    %590 = vmatpush.msra.mxu0 0.0
    %591 = vmatpush.msra.mxu0 0.0
    %592 = vmatpush.msra.mxu0 0.0
    %593 = vmatpush.msra.mxu0 %v551
    %594 = vmatpush.msra.mxu0 %v543
    %595 = vmatpush.msra.mxu0 %v535
    %596 = vmatpush.msra.mxu0 %v527
    %597 = vmatmul.f32.gmra.mxu0 %v559
    %v598 = vpop.f32.mrf.mxu0
    %v599 = vadd.f32 0.0, %v598
    %600 = vdwg.mxu0
    %601 = vmatpush.msra.mxu0 0.0
    %602 = vmatpush.msra.mxu0 0.0
    %603 = vmatpush.msra.mxu0 0.0
    %604 = vmatpush.msra.mxu0 0.0
    %605 = vmatpush.msra.mxu0 0.0
    %606 = vmatpush.msra.mxu0 0.0
    %607 = vmatpush.msra.mxu0 0.0
    %608 = vmatpush.msra.mxu0 0.0
    %609 = vmatpush.msra.mxu0 0.0
    %610 = vmatpush.msra.mxu0 0.0
    %611 = vmatpush.msra.mxu0 0.0
    %612 = vmatpush.msra.mxu0 0.0
    %613 = vmatpush.msra.mxu0 %v552
    %614 = vmatpush.msra.mxu0 %v544
    %615 = vmatpush.msra.mxu0 %v536
    %616 = vmatpush.msra.mxu0 %v528
    %617 = vmatmul.f32.gmra.mxu0 %v559
    %v618 = vpop.f32.mrf.mxu0
    %v619 = vadd.f32 0.0, %v618
    %620 = vdwg.mxu0
    %621 = vmatpush.msra.mxu0 0.0
    %622 = vmatpush.msra.mxu0 0.0
    %623 = vmatpush.msra.mxu0 0.0
    %624 = vmatpush.msra.mxu0 0.0
    %625 = vmatpush.msra.mxu0 0.0
    %626 = vmatpush.msra.mxu0 0.0
    %627 = vmatpush.msra.mxu0 0.0
    %628 = vmatpush.msra.mxu0 0.0
    %629 = vmatpush.msra.mxu0 0.0
    %630 = vmatpush.msra.mxu0 0.0
    %631 = vmatpush.msra.mxu0 0.0
    %632 = vmatpush.msra.mxu0 0.0
    %633 = vmatpush.msra.mxu0 %v553
    %634 = vmatpush.msra.mxu0 %v545
    %635 = vmatpush.msra.mxu0 %v537
    %636 = vmatpush.msra.mxu0 %v529
    %637 = vmatmul.f32.gmra.mxu0 %v559
    %v638 = vpop.f32.mrf.mxu0
    %v639 = vadd.f32 0.0, %v638
    %640 = vdwg.mxu0
    %641 = vmatpush.msra.mxu0 0.0
    %642 = vmatpush.msra.mxu0 0.0
    %643 = vmatpush.msra.mxu0 0.0
    %644 = vmatpush.msra.mxu0 0.0
    %645 = vmatpush.msra.mxu0 0.0
    %646 = vmatpush.msra.mxu0 0.0
    %647 = vmatpush.msra.mxu0 0.0
    %648 = vmatpush.msra.mxu0 0.0
    %649 = vmatpush.msra.mxu0 0.0
    %650 = vmatpush.msra.mxu0 0.0
    %651 = vmatpush.msra.mxu0 0.0
    %652 = vmatpush.msra.mxu0 0.0
    %653 = vmatpush.msra.mxu0 %v554
    %654 = vmatpush.msra.mxu0 %v546
    %655 = vmatpush.msra.mxu0 %v538
    %656 = vmatpush.msra.mxu0 %v530
    %657 = vmatmul.f32.gmra.mxu0 %v559
    %v658 = vpop.f32.mrf.mxu0
    %v659 = vadd.f32 0.0, %v658
    %660 = vdwg.mxu0
    %661 = vmatpush.msra.mxu0 0.0
    %662 = vmatpush.msra.mxu0 0.0
    %663 = vmatpush.msra.mxu0 0.0
    %664 = vmatpush.msra.mxu0 0.0
    %665 = vmatpush.msra.mxu0 0.0
    %666 = vmatpush.msra.mxu0 0.0
    %667 = vmatpush.msra.mxu0 0.0
    %668 = vmatpush.msra.mxu0 0.0
    %669 = vmatpush.msra.mxu0 0.0
    %670 = vmatpush.msra.mxu0 0.0
    %671 = vmatpush.msra.mxu0 0.0
    %672 = vmatpush.msra.mxu0 0.0
    %673 = vmatpush.msra.mxu0 %v555
    %674 = vmatpush.msra.mxu0 %v547
    %675 = vmatpush.msra.mxu0 %v539
    %676 = vmatpush.msra.mxu0 %v531
    %677 = vmatmul.f32.gmra.mxu0 %v559
    %v678 = vpop.f32.mrf.mxu0
    %v679 = vadd.f32 0.0, %v678
    %680 = vdwg.mxu0
    %681 = vmatpush.msra.mxu0 0.0
    %682 = vmatpush.msra.mxu0 0.0
    %683 = vmatpush.msra.mxu0 0.0
    %684 = vmatpush.msra.mxu0 0.0
    %685 = vmatpush.msra.mxu0 0.0
    %686 = vmatpush.msra.mxu0 0.0
    %687 = vmatpush.msra.mxu0 0.0
    %688 = vmatpush.msra.mxu0 0.0
    %689 = vmatpush.msra.mxu0 0.0
    %690 = vmatpush.msra.mxu0 0.0
    %691 = vmatpush.msra.mxu0 0.0
    %692 = vmatpush.msra.mxu0 0.0
    %693 = vmatpush.msra.mxu0 %v556
    %694 = vmatpush.msra.mxu0 %v548
    %695 = vmatpush.msra.mxu0 %v540
    %696 = vmatpush.msra.mxu0 %v532
    %697 = vmatmul.f32.gmra.mxu0 %v559
    %v698 = vpop.f32.mrf.mxu0
    %v699 = vadd.f32 0.0, %v698
    %700 = vdwg.mxu0
    %701 = vmatpush.msra.mxu0 0.0
    %702 = vmatpush.msra.mxu0 0.0
    %703 = vmatpush.msra.mxu0 0.0
    %704 = vmatpush.msra.mxu0 0.0
    %705 = vmatpush.msra.mxu0 0.0
    %706 = vmatpush.msra.mxu0 0.0
    %707 = vmatpush.msra.mxu0 0.0
    %708 = vmatpush.msra.mxu0 0.0
    %709 = vmatpush.msra.mxu0 0.0
    %710 = vmatpush.msra.mxu0 0.0
    %711 = vmatpush.msra.mxu0 0.0
    %712 = vmatpush.msra.mxu0 0.0
    %713 = vmatpush.msra.mxu0 %v557
    %714 = vmatpush.msra.mxu0 %v549
    %715 = vmatpush.msra.mxu0 %v541
    %716 = vmatpush.msra.mxu0 %v533
    %717 = vmatmul.f32.gmra.mxu0 %v559
    %v718 = vpop.f32.mrf.mxu0
    %v719 = vadd.f32 0.0, %v718
    %720 = vdwg.mxu0
    %v721 = vadd.f32 %v517, %v579
    %v722 = vadd.f32 %v518, %v599
    %v723 = vadd.f32 %v519, %v619
    %v724 = vadd.f32 %v520, %v639
    %v725 = vadd.f32 %v521, %v659
    %v726 = vadd.f32 %v522, %v679
    %v727 = vadd.f32 %v523, %v699
    %v728 = vadd.f32 %v524, %v719
    %s729 = scalar_lea.vmem [#allocation2], 8
    %v730 = vld [vmem:[%s729] sm:$0xff]
    %v732 = vsel %vm149, %v730, 0
    %734 = vmatpush.msra.mxu0 0.0
    %735 = vmatpush.msra.mxu0 0.0
    %736 = vmatpush.msra.mxu0 0.0
    %737 = vmatpush.msra.mxu0 0.0
    %738 = vmatpush.msra.mxu0 0.0
    %739 = vmatpush.msra.mxu0 0.0
    %740 = vmatpush.msra.mxu0 0.0
    %741 = vmatpush.msra.mxu0 0.0
    %742 = vmatpush.msra.mxu0 0.0
    %743 = vmatpush.msra.mxu0 0.0
    %744 = vmatpush.msra.mxu0 0.0
    %745 = vmatpush.msra.mxu0 0.0
    %746 = vmatpush.msra.mxu0 %v141
    %747 = vmatpush.msra.mxu0 %v133
    %748 = vmatpush.msra.mxu0 %v125
    %749 = vmatpush.msra.mxu0 %v117
    %750 = vmatmul.f32.gmra.mxu0 %v732
    %v751 = vpop.f32.mrf.mxu0
    %v752 = vadd.f32 0.0, %v751
    %753 = vdwg.mxu0
    %754 = vmatpush.msra.mxu0 0.0
    %755 = vmatpush.msra.mxu0 0.0
    %756 = vmatpush.msra.mxu0 0.0
    %757 = vmatpush.msra.mxu0 0.0
    %758 = vmatpush.msra.mxu0 0.0
    %759 = vmatpush.msra.mxu0 0.0
    %760 = vmatpush.msra.mxu0 0.0
    %761 = vmatpush.msra.mxu0 0.0
    %762 = vmatpush.msra.mxu0 0.0
    %763 = vmatpush.msra.mxu0 0.0
    %764 = vmatpush.msra.mxu0 0.0
    %765 = vmatpush.msra.mxu0 0.0
    %766 = vmatpush.msra.mxu0 %v142
    %767 = vmatpush.msra.mxu0 %v134
    %768 = vmatpush.msra.mxu0 %v126
    %769 = vmatpush.msra.mxu0 %v118
    %770 = vmatmul.f32.gmra.mxu0 %v732
    %v771 = vpop.f32.mrf.mxu0
    %v772 = vadd.f32 0.0, %v771
    %773 = vdwg.mxu0
    %774 = vmatpush.msra.mxu0 0.0
    %775 = vmatpush.msra.mxu0 0.0
    %776 = vmatpush.msra.mxu0 0.0
    %777 = vmatpush.msra.mxu0 0.0
    %778 = vmatpush.msra.mxu0 0.0
    %779 = vmatpush.msra.mxu0 0.0
    %780 = vmatpush.msra.mxu0 0.0
    %781 = vmatpush.msra.mxu0 0.0
    %782 = vmatpush.msra.mxu0 0.0
    %783 = vmatpush.msra.mxu0 0.0
    %784 = vmatpush.msra.mxu0 0.0
    %785 = vmatpush.msra.mxu0 0.0
    %786 = vmatpush.msra.mxu0 %v143
    %787 = vmatpush.msra.mxu0 %v135
    %788 = vmatpush.msra.mxu0 %v127
    %789 = vmatpush.msra.mxu0 %v119
    %790 = vmatmul.f32.gmra.mxu0 %v732
    %v791 = vpop.f32.mrf.mxu0
    %v792 = vadd.f32 0.0, %v791
    %793 = vdwg.mxu0
    %794 = vmatpush.msra.mxu0 0.0
    %795 = vmatpush.msra.mxu0 0.0
    %796 = vmatpush.msra.mxu0 0.0
    %797 = vmatpush.msra.mxu0 0.0
    %798 = vmatpush.msra.mxu0 0.0
    %799 = vmatpush.msra.mxu0 0.0
    %800 = vmatpush.msra.mxu0 0.0
    %801 = vmatpush.msra.mxu0 0.0
    %802 = vmatpush.msra.mxu0 0.0
    %803 = vmatpush.msra.mxu0 0.0
    %804 = vmatpush.msra.mxu0 0.0
    %805 = vmatpush.msra.mxu0 0.0
    %806 = vmatpush.msra.mxu0 %v144
    %807 = vmatpush.msra.mxu0 %v136
    %808 = vmatpush.msra.mxu0 %v128
    %809 = vmatpush.msra.mxu0 %v120
    %810 = vmatmul.f32.gmra.mxu0 %v732
    %v811 = vpop.f32.mrf.mxu0
    %v812 = vadd.f32 0.0, %v811
    %813 = vdwg.mxu0
    %814 = vmatpush.msra.mxu0 0.0
    %815 = vmatpush.msra.mxu0 0.0
    %816 = vmatpush.msra.mxu0 0.0
    %817 = vmatpush.msra.mxu0 0.0
    %818 = vmatpush.msra.mxu0 0.0
    %819 = vmatpush.msra.mxu0 0.0
    %820 = vmatpush.msra.mxu0 0.0
    %821 = vmatpush.msra.mxu0 0.0
    %822 = vmatpush.msra.mxu0 0.0
    %823 = vmatpush.msra.mxu0 0.0
    %824 = vmatpush.msra.mxu0 0.0
    %825 = vmatpush.msra.mxu0 0.0
    %826 = vmatpush.msra.mxu0 %v145
    %827 = vmatpush.msra.mxu0 %v137
    %828 = vmatpush.msra.mxu0 %v129
    %829 = vmatpush.msra.mxu0 %v121
    %830 = vmatmul.f32.gmra.mxu0 %v732
    %v831 = vpop.f32.mrf.mxu0
    %v832 = vadd.f32 0.0, %v831
    %833 = vdwg.mxu0
    %834 = vmatpush.msra.mxu0 0.0
    %835 = vmatpush.msra.mxu0 0.0
    %836 = vmatpush.msra.mxu0 0.0
    %837 = vmatpush.msra.mxu0 0.0
    %838 = vmatpush.msra.mxu0 0.0
    %839 = vmatpush.msra.mxu0 0.0
    %840 = vmatpush.msra.mxu0 0.0
    %841 = vmatpush.msra.mxu0 0.0
    %842 = vmatpush.msra.mxu0 0.0
    %843 = vmatpush.msra.mxu0 0.0
    %844 = vmatpush.msra.mxu0 0.0
    %845 = vmatpush.msra.mxu0 0.0
    %846 = vmatpush.msra.mxu0 %v146
    %847 = vmatpush.msra.mxu0 %v138
    %848 = vmatpush.msra.mxu0 %v130
    %849 = vmatpush.msra.mxu0 %v122
    %850 = vmatmul.f32.gmra.mxu0 %v732
    %v851 = vpop.f32.mrf.mxu0
    %v852 = vadd.f32 0.0, %v851
    %853 = vdwg.mxu0
    %854 = vmatpush.msra.mxu0 0.0
    %855 = vmatpush.msra.mxu0 0.0
    %856 = vmatpush.msra.mxu0 0.0
    %857 = vmatpush.msra.mxu0 0.0
    %858 = vmatpush.msra.mxu0 0.0
    %859 = vmatpush.msra.mxu0 0.0
    %860 = vmatpush.msra.mxu0 0.0
    %861 = vmatpush.msra.mxu0 0.0
    %862 = vmatpush.msra.mxu0 0.0
    %863 = vmatpush.msra.mxu0 0.0
    %864 = vmatpush.msra.mxu0 0.0
    %865 = vmatpush.msra.mxu0 0.0
    %866 = vmatpush.msra.mxu0 %v147
    %867 = vmatpush.msra.mxu0 %v139
    %868 = vmatpush.msra.mxu0 %v131
    %869 = vmatpush.msra.mxu0 %v123
    %870 = vmatmul.f32.gmra.mxu0 %v732
    %v871 = vpop.f32.mrf.mxu0
    %v872 = vadd.f32 0.0, %v871
    %873 = vdwg.mxu0
    %874 = vmatpush.msra.mxu0 0.0
    %875 = vmatpush.msra.mxu0 0.0
    %876 = vmatpush.msra.mxu0 0.0
    %877 = vmatpush.msra.mxu0 0.0
    %878 = vmatpush.msra.mxu0 0.0
    %879 = vmatpush.msra.mxu0 0.0
    %880 = vmatpush.msra.mxu0 0.0
    %881 = vmatpush.msra.mxu0 0.0
    %882 = vmatpush.msra.mxu0 0.0
    %883 = vmatpush.msra.mxu0 0.0
    %884 = vmatpush.msra.mxu0 0.0
    %885 = vmatpush.msra.mxu0 0.0
    %886 = vmatpush.msra.mxu0 %v148
    %887 = vmatpush.msra.mxu0 %v140
    %888 = vmatpush.msra.mxu0 %v132
    %889 = vmatpush.msra.mxu0 %v124
    %890 = vmatmul.f32.gmra.mxu0 %v732
    %v891 = vpop.f32.mrf.mxu0
    %v892 = vadd.f32 0.0, %v891
    %893 = vdwg.mxu0
    %v894 = vadd.f32 %v100, %v752
    %v895 = vadd.f32 %v101, %v772
    %v896 = vadd.f32 %v102, %v792
    %v897 = vadd.f32 %v103, %v812
    %v898 = vadd.f32 %v104, %v832
    %v899 = vadd.f32 %v105, %v852
    %v900 = vadd.f32 %v106, %v872
    %v901 = vadd.f32 %v107, %v892
    %v902 = vrot.slane %v730, 1
    %v903 = vsel %vm149, %v902, 0
    %905 = vmatpush.msra.mxu0 0.0
    %906 = vmatpush.msra.mxu0 0.0
    %907 = vmatpush.msra.mxu0 0.0
    %908 = vmatpush.msra.mxu0 0.0
    %909 = vmatpush.msra.mxu0 0.0
    %910 = vmatpush.msra.mxu0 0.0
    %911 = vmatpush.msra.mxu0 0.0
    %912 = vmatpush.msra.mxu0 0.0
    %913 = vmatpush.msra.mxu0 0.0
    %914 = vmatpush.msra.mxu0 0.0
    %915 = vmatpush.msra.mxu0 0.0
    %916 = vmatpush.msra.mxu0 0.0
    %917 = vmatpush.msra.mxu0 %v346
    %918 = vmatpush.msra.mxu0 %v338
    %919 = vmatpush.msra.mxu0 %v330
    %920 = vmatpush.msra.mxu0 %v322
    %921 = vmatmul.f32.gmra.mxu0 %v903
    %v922 = vpop.f32.mrf.mxu0
    %v923 = vadd.f32 0.0, %v922
    %924 = vdwg.mxu0
    %925 = vmatpush.msra.mxu0 0.0
    %926 = vmatpush.msra.mxu0 0.0
    %927 = vmatpush.msra.mxu0 0.0
    %928 = vmatpush.msra.mxu0 0.0
    %929 = vmatpush.msra.mxu0 0.0
    %930 = vmatpush.msra.mxu0 0.0
    %931 = vmatpush.msra.mxu0 0.0
    %932 = vmatpush.msra.mxu0 0.0
    %933 = vmatpush.msra.mxu0 0.0
    %934 = vmatpush.msra.mxu0 0.0
    %935 = vmatpush.msra.mxu0 0.0
    %936 = vmatpush.msra.mxu0 0.0
    %937 = vmatpush.msra.mxu0 %v347
    %938 = vmatpush.msra.mxu0 %v339
    %939 = vmatpush.msra.mxu0 %v331
    %940 = vmatpush.msra.mxu0 %v323
    %941 = vmatmul.f32.gmra.mxu0 %v903
    %v942 = vpop.f32.mrf.mxu0
    %v943 = vadd.f32 0.0, %v942
    %944 = vdwg.mxu0
    %945 = vmatpush.msra.mxu0 0.0
    %946 = vmatpush.msra.mxu0 0.0
    %947 = vmatpush.msra.mxu0 0.0
    %948 = vmatpush.msra.mxu0 0.0
    %949 = vmatpush.msra.mxu0 0.0
    %950 = vmatpush.msra.mxu0 0.0
    %951 = vmatpush.msra.mxu0 0.0
    %952 = vmatpush.msra.mxu0 0.0
    %953 = vmatpush.msra.mxu0 0.0
    %954 = vmatpush.msra.mxu0 0.0
    %955 = vmatpush.msra.mxu0 0.0
    %956 = vmatpush.msra.mxu0 0.0
    %957 = vmatpush.msra.mxu0 %v348
    %958 = vmatpush.msra.mxu0 %v340
    %959 = vmatpush.msra.mxu0 %v332
    %960 = vmatpush.msra.mxu0 %v324
    %961 = vmatmul.f32.gmra.mxu0 %v903
    %v962 = vpop.f32.mrf.mxu0
    %v963 = vadd.f32 0.0, %v962
    %964 = vdwg.mxu0
    %965 = vmatpush.msra.mxu0 0.0
    %966 = vmatpush.msra.mxu0 0.0
    %967 = vmatpush.msra.mxu0 0.0
    %968 = vmatpush.msra.mxu0 0.0
    %969 = vmatpush.msra.mxu0 0.0
    %970 = vmatpush.msra.mxu0 0.0
    %971 = vmatpush.msra.mxu0 0.0
    %972 = vmatpush.msra.mxu0 0.0
    %973 = vmatpush.msra.mxu0 0.0
    %974 = vmatpush.msra.mxu0 0.0
    %975 = vmatpush.msra.mxu0 0.0
    %976 = vmatpush.msra.mxu0 0.0
    %977 = vmatpush.msra.mxu0 %v349
    %978 = vmatpush.msra.mxu0 %v341
    %979 = vmatpush.msra.mxu0 %v333
    %980 = vmatpush.msra.mxu0 %v325
    %981 = vmatmul.f32.gmra.mxu0 %v903
    %v982 = vpop.f32.mrf.mxu0
    %v983 = vadd.f32 0.0, %v982
    %984 = vdwg.mxu0
    %985 = vmatpush.msra.mxu0 0.0
    %986 = vmatpush.msra.mxu0 0.0
    %987 = vmatpush.msra.mxu0 0.0
    %988 = vmatpush.msra.mxu0 0.0
    %989 = vmatpush.msra.mxu0 0.0
    %990 = vmatpush.msra.mxu0 0.0
    %991 = vmatpush.msra.mxu0 0.0
    %992 = vmatpush.msra.mxu0 0.0
    %993 = vmatpush.msra.mxu0 0.0
    %994 = vmatpush.msra.mxu0 0.0
    %995 = vmatpush.msra.mxu0 0.0
    %996 = vmatpush.msra.mxu0 0.0
    %997 = vmatpush.msra.mxu0 %v350
    %998 = vmatpush.msra.mxu0 %v342
    %999 = vmatpush.msra.mxu0 %v334
    %1000 = vmatpush.msra.mxu0 %v326
    %1001 = vmatmul.f32.gmra.mxu0 %v903
    %v1002 = vpop.f32.mrf.mxu0
    %v1003 = vadd.f32 0.0, %v1002
    %1004 = vdwg.mxu0
    %1005 = vmatpush.msra.mxu0 0.0
    %1006 = vmatpush.msra.mxu0 0.0
    %1007 = vmatpush.msra.mxu0 0.0
    %1008 = vmatpush.msra.mxu0 0.0
    %1009 = vmatpush.msra.mxu0 0.0
    %1010 = vmatpush.msra.mxu0 0.0
    %1011 = vmatpush.msra.mxu0 0.0
    %1012 = vmatpush.msra.mxu0 0.0
    %1013 = vmatpush.msra.mxu0 0.0
    %1014 = vmatpush.msra.mxu0 0.0
    %1015 = vmatpush.msra.mxu0 0.0
    %1016 = vmatpush.msra.mxu0 0.0
    %1017 = vmatpush.msra.mxu0 %v351
    %1018 = vmatpush.msra.mxu0 %v343
    %1019 = vmatpush.msra.mxu0 %v335
    %1020 = vmatpush.msra.mxu0 %v327
    %1021 = vmatmul.f32.gmra.mxu0 %v903
    %v1022 = vpop.f32.mrf.mxu0
    %v1023 = vadd.f32 0.0, %v1022
    %1024 = vdwg.mxu0
    %1025 = vmatpush.msra.mxu0 0.0
    %1026 = vmatpush.msra.mxu0 0.0
    %1027 = vmatpush.msra.mxu0 0.0
    %1028 = vmatpush.msra.mxu0 0.0
    %1029 = vmatpush.msra.mxu0 0.0
    %1030 = vmatpush.msra.mxu0 0.0
    %1031 = vmatpush.msra.mxu0 0.0
    %1032 = vmatpush.msra.mxu0 0.0
    %1033 = vmatpush.msra.mxu0 0.0
    %1034 = vmatpush.msra.mxu0 0.0
    %1035 = vmatpush.msra.mxu0 0.0
    %1036 = vmatpush.msra.mxu0 0.0
    %1037 = vmatpush.msra.mxu0 %v352
    %1038 = vmatpush.msra.mxu0 %v344
    %1039 = vmatpush.msra.mxu0 %v336
    %1040 = vmatpush.msra.mxu0 %v328
    %1041 = vmatmul.f32.gmra.mxu0 %v903
    %v1042 = vpop.f32.mrf.mxu0
    %v1043 = vadd.f32 0.0, %v1042
    %1044 = vdwg.mxu0
    %1045 = vmatpush.msra.mxu0 0.0
    %1046 = vmatpush.msra.mxu0 0.0
    %1047 = vmatpush.msra.mxu0 0.0
    %1048 = vmatpush.msra.mxu0 0.0
    %1049 = vmatpush.msra.mxu0 0.0
    %1050 = vmatpush.msra.mxu0 0.0
    %1051 = vmatpush.msra.mxu0 0.0
    %1052 = vmatpush.msra.mxu0 0.0
    %1053 = vmatpush.msra.mxu0 0.0
    %1054 = vmatpush.msra.mxu0 0.0
    %1055 = vmatpush.msra.mxu0 0.0
    %1056 = vmatpush.msra.mxu0 0.0
    %1057 = vmatpush.msra.mxu0 %v353
    %1058 = vmatpush.msra.mxu0 %v345
    %1059 = vmatpush.msra.mxu0 %v337
    %1060 = vmatpush.msra.mxu0 %v329
    %1061 = vmatmul.f32.gmra.mxu0 %v903
    %v1062 = vpop.f32.mrf.mxu0
    %v1063 = vadd.f32 0.0, %v1062
    %1064 = vdwg.mxu0
    %v1065 = vadd.f32 %v894, %v923
    %v1066 = vadd.f32 %v895, %v943
    %v1067 = vadd.f32 %v896, %v963
    %v1068 = vadd.f32 %v897, %v983
    %v1069 = vadd.f32 %v898, %v1003
    %v1070 = vadd.f32 %v899, %v1023
    %v1071 = vadd.f32 %v900, %v1043
    %v1072 = vadd.f32 %v901, %v1063
    %v1073 = vrot.slane %v730, 2
    %v1074 = vsel %vm149, %v1073, 0
    %1076 = vmatpush.msra.mxu0 0.0
    %1077 = vmatpush.msra.mxu0 0.0
    %1078 = vmatpush.msra.mxu0 0.0
    %1079 = vmatpush.msra.mxu0 0.0
    %1080 = vmatpush.msra.mxu0 0.0
    %1081 = vmatpush.msra.mxu0 0.0
    %1082 = vmatpush.msra.mxu0 0.0
    %1083 = vmatpush.msra.mxu0 0.0
    %1084 = vmatpush.msra.mxu0 0.0
    %1085 = vmatpush.msra.mxu0 0.0
    %1086 = vmatpush.msra.mxu0 0.0
    %1087 = vmatpush.msra.mxu0 0.0
    %1088 = vmatpush.msra.mxu0 %v550
    %1089 = vmatpush.msra.mxu0 %v542
    %1090 = vmatpush.msra.mxu0 %v534
    %1091 = vmatpush.msra.mxu0 %v526
    %1092 = vmatmul.f32.gmra.mxu0 %v1074
    %v1093 = vpop.f32.mrf.mxu0
    %v1094 = vadd.f32 0.0, %v1093
    %1095 = vdwg.mxu0
    %1096 = vmatpush.msra.mxu0 0.0
    %1097 = vmatpush.msra.mxu0 0.0
    %1098 = vmatpush.msra.mxu0 0.0
    %1099 = vmatpush.msra.mxu0 0.0
    %1100 = vmatpush.msra.mxu0 0.0
    %1101 = vmatpush.msra.mxu0 0.0
    %1102 = vmatpush.msra.mxu0 0.0
    %1103 = vmatpush.msra.mxu0 0.0
    %1104 = vmatpush.msra.mxu0 0.0
    %1105 = vmatpush.msra.mxu0 0.0
    %1106 = vmatpush.msra.mxu0 0.0
    %1107 = vmatpush.msra.mxu0 0.0
    %1108 = vmatpush.msra.mxu0 %v551
    %1109 = vmatpush.msra.mxu0 %v543
    %1110 = vmatpush.msra.mxu0 %v535
    %1111 = vmatpush.msra.mxu0 %v527
    %1112 = vmatmul.f32.gmra.mxu0 %v1074
    %v1113 = vpop.f32.mrf.mxu0
    %v1114 = vadd.f32 0.0, %v1113
    %1115 = vdwg.mxu0
    %1116 = vmatpush.msra.mxu0 0.0
    %1117 = vmatpush.msra.mxu0 0.0
    %1118 = vmatpush.msra.mxu0 0.0
    %1119 = vmatpush.msra.mxu0 0.0
    %1120 = vmatpush.msra.mxu0 0.0
    %1121 = vmatpush.msra.mxu0 0.0
    %1122 = vmatpush.msra.mxu0 0.0
    %1123 = vmatpush.msra.mxu0 0.0
    %1124 = vmatpush.msra.mxu0 0.0
    %1125 = vmatpush.msra.mxu0 0.0
    %1126 = vmatpush.msra.mxu0 0.0
    %1127 = vmatpush.msra.mxu0 0.0
    %1128 = vmatpush.msra.mxu0 %v552
    %1129 = vmatpush.msra.mxu0 %v544
    %1130 = vmatpush.msra.mxu0 %v536
    %1131 = vmatpush.msra.mxu0 %v528
    %1132 = vmatmul.f32.gmra.mxu0 %v1074
    %v1133 = vpop.f32.mrf.mxu0
    %v1134 = vadd.f32 0.0, %v1133
    %1135 = vdwg.mxu0
    %1136 = vmatpush.msra.mxu0 0.0
    %1137 = vmatpush.msra.mxu0 0.0
    %1138 = vmatpush.msra.mxu0 0.0
    %1139 = vmatpush.msra.mxu0 0.0
    %1140 = vmatpush.msra.mxu0 0.0
    %1141 = vmatpush.msra.mxu0 0.0
    %1142 = vmatpush.msra.mxu0 0.0
    %1143 = vmatpush.msra.mxu0 0.0
    %1144 = vmatpush.msra.mxu0 0.0
    %1145 = vmatpush.msra.mxu0 0.0
    %1146 = vmatpush.msra.mxu0 0.0
    %1147 = vmatpush.msra.mxu0 0.0
    %1148 = vmatpush.msra.mxu0 %v553
    %1149 = vmatpush.msra.mxu0 %v545
    %1150 = vmatpush.msra.mxu0 %v537
    %1151 = vmatpush.msra.mxu0 %v529
    %1152 = vmatmul.f32.gmra.mxu0 %v1074
    %v1153 = vpop.f32.mrf.mxu0
    %v1154 = vadd.f32 0.0, %v1153
    %1155 = vdwg.mxu0
    %1156 = vmatpush.msra.mxu0 0.0
    %1157 = vmatpush.msra.mxu0 0.0
    %1158 = vmatpush.msra.mxu0 0.0
    %1159 = vmatpush.msra.mxu0 0.0
    %1160 = vmatpush.msra.mxu0 0.0
    %1161 = vmatpush.msra.mxu0 0.0
    %1162 = vmatpush.msra.mxu0 0.0
    %1163 = vmatpush.msra.mxu0 0.0
    %1164 = vmatpush.msra.mxu0 0.0
    %1165 = vmatpush.msra.mxu0 0.0
    %1166 = vmatpush.msra.mxu0 0.0
    %1167 = vmatpush.msra.mxu0 0.0
    %1168 = vmatpush.msra.mxu0 %v554
    %1169 = vmatpush.msra.mxu0 %v546
    %1170 = vmatpush.msra.mxu0 %v538
    %1171 = vmatpush.msra.mxu0 %v530
    %1172 = vmatmul.f32.gmra.mxu0 %v1074
    %v1173 = vpop.f32.mrf.mxu0
    %v1174 = vadd.f32 0.0, %v1173
    %1175 = vdwg.mxu0
    %1176 = vmatpush.msra.mxu0 0.0
    %1177 = vmatpush.msra.mxu0 0.0
    %1178 = vmatpush.msra.mxu0 0.0
    %1179 = vmatpush.msra.mxu0 0.0
    %1180 = vmatpush.msra.mxu0 0.0
    %1181 = vmatpush.msra.mxu0 0.0
    %1182 = vmatpush.msra.mxu0 0.0
    %1183 = vmatpush.msra.mxu0 0.0
    %1184 = vmatpush.msra.mxu0 0.0
    %1185 = vmatpush.msra.mxu0 0.0
    %1186 = vmatpush.msra.mxu0 0.0
    %1187 = vmatpush.msra.mxu0 0.0
    %1188 = vmatpush.msra.mxu0 %v555
    %1189 = vmatpush.msra.mxu0 %v547
    %1190 = vmatpush.msra.mxu0 %v539
    %1191 = vmatpush.msra.mxu0 %v531
    %1192 = vmatmul.f32.gmra.mxu0 %v1074
    %v1193 = vpop.f32.mrf.mxu0
    %v1194 = vadd.f32 0.0, %v1193
    %1195 = vdwg.mxu0
    %1196 = vmatpush.msra.mxu0 0.0
    %1197 = vmatpush.msra.mxu0 0.0
    %1198 = vmatpush.msra.mxu0 0.0
    %1199 = vmatpush.msra.mxu0 0.0
    %1200 = vmatpush.msra.mxu0 0.0
    %1201 = vmatpush.msra.mxu0 0.0
    %1202 = vmatpush.msra.mxu0 0.0
    %1203 = vmatpush.msra.mxu0 0.0
    %1204 = vmatpush.msra.mxu0 0.0
    %1205 = vmatpush.msra.mxu0 0.0
    %1206 = vmatpush.msra.mxu0 0.0
    %1207 = vmatpush.msra.mxu0 0.0
    %1208 = vmatpush.msra.mxu0 %v556
    %1209 = vmatpush.msra.mxu0 %v548
    %1210 = vmatpush.msra.mxu0 %v540
    %1211 = vmatpush.msra.mxu0 %v532
    %1212 = vmatmul.f32.gmra.mxu0 %v1074
    %v1213 = vpop.f32.mrf.mxu0
    %v1214 = vadd.f32 0.0, %v1213
    %1215 = vdwg.mxu0
    %1216 = vmatpush.msra.mxu0 0.0
    %1217 = vmatpush.msra.mxu0 0.0
    %1218 = vmatpush.msra.mxu0 0.0
    %1219 = vmatpush.msra.mxu0 0.0
    %1220 = vmatpush.msra.mxu0 0.0
    %1221 = vmatpush.msra.mxu0 0.0
    %1222 = vmatpush.msra.mxu0 0.0
    %1223 = vmatpush.msra.mxu0 0.0
    %1224 = vmatpush.msra.mxu0 0.0
    %1225 = vmatpush.msra.mxu0 0.0
    %1226 = vmatpush.msra.mxu0 0.0
    %1227 = vmatpush.msra.mxu0 0.0
    %1228 = vmatpush.msra.mxu0 %v557
    %1229 = vmatpush.msra.mxu0 %v549
    %1230 = vmatpush.msra.mxu0 %v541
    %1231 = vmatpush.msra.mxu0 %v533
    %1232 = vmatmul.f32.gmra.mxu0 %v1074
    %v1233 = vpop.f32.mrf.mxu0
    %v1234 = vadd.f32 0.0, %v1233
    %1235 = vdwg.mxu0
    %v1236 = vadd.f32 %v1065, %v1094
    %v1237 = vadd.f32 %v1066, %v1114
    %v1238 = vadd.f32 %v1067, %v1134
    %v1239 = vadd.f32 %v1068, %v1154
    %v1240 = vadd.f32 %v1069, %v1174
    %v1241 = vadd.f32 %v1070, %v1194
    %v1242 = vadd.f32 %v1071, %v1214
    %v1243 = vadd.f32 %v1072, %v1234
    %v1248 = vrot.slane %v1236, 7
    %v1249 = vrot.slane %v1237, 7
    %v1250 = vrot.slane %v1238, 7
    %v1251 = vrot.slane %v1239, 7
    %vm1256 = vcmask 1040384
    %v1257 = vsel %vm1256, %v721, %v1248
    %v1258 = vsel %vm1256, %v722, %v1249
    %v1259 = vsel %vm1256, %v723, %v1250
    %v1260 = vsel %vm1256, %v724, %v1251
    %v1265 = vrot.slane %v721, 1
    %v1266 = vrot.slane %v722, 1
    %v1267 = vrot.slane %v723, 1
    %v1268 = vrot.slane %v724, 1
    %v1273 = vsel %vm1256, %v1265, %v1236
    %v1274 = vsel %vm1256, %v1266, %v1237
    %v1275 = vsel %vm1256, %v1267, %v1238
    %v1276 = vsel %vm1256, %v1268, %v1239
    %v1277 = vrot.slane %v721, 2
    %v1278 = vrot.slane %v722, 2
    %v1279 = vrot.slane %v723, 2
    %v1280 = vrot.slane %v724, 2
    %v1285 = vrot.slane %v1236, 1
    %v1286 = vrot.slane %v1237, 1
    %v1287 = vrot.slane %v1238, 1
    %v1288 = vrot.slane %v1239, 1
    %v1293 = vsel %vm1256, %v1277, %v1285
    %v1294 = vsel %vm1256, %v1278, %v1286
    %v1295 = vsel %vm1256, %v1279, %v1287
    %v1296 = vsel %vm1256, %v1280, %v1288
    %v1297 = vrot.slane %v721, 3
    %v1298 = vrot.slane %v722, 3
    %v1299 = vrot.slane %v723, 3
    %v1300 = vrot.slane %v724, 3
    %v1305 = vrot.slane %v1236, 2
    %v1306 = vrot.slane %v1237, 2
    %v1307 = vrot.slane %v1238, 2
    %v1308 = vrot.slane %v1239, 2
    %v1313 = vsel %vm1256, %v1297, %v1305
    %v1314 = vsel %vm1256, %v1298, %v1306
    %v1315 = vsel %vm1256, %v1299, %v1307
    %v1316 = vsel %vm1256, %v1300, %v1308
    %v1317 = vrot.slane %v721, 4
    %v1318 = vrot.slane %v722, 4
    %v1319 = vrot.slane %v723, 4
    %v1320 = vrot.slane %v724, 4
    %v1325 = vrot.slane %v1236, 3
    %v1326 = vrot.slane %v1237, 3
    %v1327 = vrot.slane %v1238, 3
    %v1328 = vrot.slane %v1239, 3
    %v1333 = vsel %vm1256, %v1317, %v1325
    %v1334 = vsel %vm1256, %v1318, %v1326
    %v1335 = vsel %vm1256, %v1319, %v1327
    %v1336 = vsel %vm1256, %v1320, %v1328
    %v1337 = vrot.slane %v721, 5
    %v1338 = vrot.slane %v722, 5
    %v1339 = vrot.slane %v723, 5
    %v1340 = vrot.slane %v724, 5
    %v1345 = vrot.slane %v1236, 4
    %v1346 = vrot.slane %v1237, 4
    %v1347 = vrot.slane %v1238, 4
    %v1348 = vrot.slane %v1239, 4
    %v1353 = vsel %vm1256, %v1337, %v1345
    %v1354 = vsel %vm1256, %v1338, %v1346
    %v1355 = vsel %vm1256, %v1339, %v1347
    %v1356 = vsel %vm1256, %v1340, %v1348
    %v1361 = vrot.slane %v725, 5
    %v1362 = vrot.slane %v726, 5
    %v1363 = vrot.slane %v727, 5
    %v1364 = vrot.slane %v728, 5
    %v1373 = vrot.slane %v1240, 4
    %v1374 = vrot.slane %v1241, 4
    %v1375 = vrot.slane %v1242, 4
    %v1376 = vrot.slane %v1243, 4
    %v1381 = vsel %vm1256, %v1361, %v1373
    %v1382 = vsel %vm1256, %v1362, %v1374
    %v1383 = vsel %vm1256, %v1363, %v1375
    %v1384 = vsel %vm1256, %v1364, %v1376
    %v1385 = vld [vmem:[#allocation7] sm:$0xff]
    %v1386 = vld [vmem:[#allocation7 + $0x8] sm:$0xff]
    %v1387 = vld [vmem:[#allocation7 + $0x10] sm:$0xff]
    %v1388 = vld [vmem:[#allocation7 + $0x18] sm:$0xff]
    %v1389 = vld [vmem:[#allocation7 + $0x20] sm:$0xff]
    %v1390 = vld [vmem:[#allocation7 + $0x28] sm:$0xff]
    %v1391 = vld [vmem:[#allocation7 + $0x30] sm:$0xff]
    %v1392 = vld [vmem:[#allocation7 + $0x38] sm:$0xff]
    %v1393 = vld [vmem:[#allocation7 + $0x40] sm:$0xff]
    %v1394 = vld [vmem:[#allocation7 + $0x48] sm:$0xff]
    %v1395 = vld [vmem:[#allocation7 + $0x50] sm:$0xff]
    %v1396 = vld [vmem:[#allocation7 + $0x58] sm:$0xff]
    %v1397 = vld [vmem:[#allocation7 + $0x60] sm:$0xff]
    %v1398 = vld [vmem:[#allocation7 + $0x68] sm:$0xff]
    %v1399 = vld [vmem:[#allocation7 + $0x70] sm:$0xff]
    %v1400 = vld [vmem:[#allocation7 + $0x78] sm:$0xff]
    %v1401 = vld [vmem:[#allocation7 + $0x80] sm:$0xff]
    %v1402 = vld [vmem:[#allocation7 + $0x88] sm:$0xff]
    %v1403 = vld [vmem:[#allocation7 + $0x90] sm:$0xff]
    %v1404 = vld [vmem:[#allocation7 + $0x98] sm:$0xff]
    %v1405 = vld [vmem:[#allocation7 + $0xa0] sm:$0xff]
    %v1406 = vld [vmem:[#allocation7 + $0xa8] sm:$0xff]
    %v1407 = vld [vmem:[#allocation7 + $0xb0] sm:$0xff]
    %v1408 = vld [vmem:[#allocation7 + $0xb8] sm:$0xff]
    %v1409 = vld [vmem:[#allocation7 + $0xc0] sm:$0xff]
    %v1410 = vld [vmem:[#allocation7 + $0xc8] sm:$0xff]
    %v1411 = vld [vmem:[#allocation7 + $0xd0] sm:$0xff]
    %v1412 = vld [vmem:[#allocation7 + $0xd8] sm:$0xff]
    %v1413 = vld [vmem:[#allocation7 + $0xe0] sm:$0xff]
    %v1414 = vld [vmem:[#allocation7 + $0xe8] sm:$0xff]
    %v1415 = vld [vmem:[#allocation7 + $0xf0] sm:$0xff]
    %v1416 = vld [vmem:[#allocation7 + $0xf8] sm:$0xff]
    %v1417 = vld [vmem:[#allocation7 + $0x100] sm:$0xff]
    %v1418 = vld [vmem:[#allocation7 + $0x108] sm:$0xff]
    %v1419 = vld [vmem:[#allocation7 + $0x110] sm:$0xff]
    %v1420 = vld [vmem:[#allocation7 + $0x118] sm:$0xff]
    %v1421 = vld [vmem:[#allocation7 + $0x120] sm:$0xff]
    %v1422 = vld [vmem:[#allocation7 + $0x128] sm:$0xff]
    %v1423 = vld [vmem:[#allocation7 + $0x130] sm:$0xff]
    %v1424 = vld [vmem:[#allocation7 + $0x138] sm:$0xff]
    %v1425 = vld [vmem:[#allocation7 + $0x140] sm:$0xff]
    %v1426 = vld [vmem:[#allocation7 + $0x148] sm:$0xff]
    %v1427 = vld [vmem:[#allocation7 + $0x150] sm:$0xff]
    %v1428 = vld [vmem:[#allocation7 + $0x158] sm:$0xff]
    %v1429 = vld [vmem:[#allocation7 + $0x160] sm:$0xff]
    %v1430 = vld [vmem:[#allocation7 + $0x168] sm:$0xff]
    %v1431 = vld [vmem:[#allocation7 + $0x170] sm:$0xff]
    %v1432 = vld [vmem:[#allocation7 + $0x178] sm:$0xff]
    %v1433 = vld [vmem:[#allocation7 + $0x180] sm:$0xff]
    %v1434 = vld [vmem:[#allocation7 + $0x188] sm:$0xff]
    %v1435 = vld [vmem:[#allocation7 + $0x190] sm:$0xff]
    %v1436 = vld [vmem:[#allocation7 + $0x198] sm:$0xff]
    %v1437 = vld [vmem:[#allocation7 + $0x1a0] sm:$0xff]
    %v1438 = vld [vmem:[#allocation7 + $0x1a8] sm:$0xff]
    %v1439 = vld [vmem:[#allocation7 + $0x1b0] sm:$0xff]
    %v1440 = vld [vmem:[#allocation7 + $0x1b8] sm:$0xff]
    %v1441 = vld [vmem:[#allocation7 + $0x1c0] sm:$0xff]
    %v1442 = vld [vmem:[#allocation7 + $0x1c8] sm:$0xff]
    %v1443 = vld [vmem:[#allocation7 + $0x1d0] sm:$0xff]
    %v1444 = vld [vmem:[#allocation7 + $0x1d8] sm:$0xff]
    %v1445 = vld [vmem:[#allocation7 + $0x1e0] sm:$0xff]
    %v1446 = vld [vmem:[#allocation7 + $0x1e8] sm:$0xff]
    %v1447 = vld [vmem:[#allocation7 + $0x1f0] sm:$0xff]
    %v1448 = vld [vmem:[#allocation7 + $0x1f8] sm:$0xff]
    %v1449 = vxor.u32 %v1257, 2147483648
    %v1450 = vxor.u32 %v1258, 2147483648
    %v1451 = vxor.u32 %v1259, 2147483648
    %v1452 = vmul.f32 %v1449, 1.442695
    %v1453 = vpow.pop %v1452
    %v1454 = vmul.f32 %v1450, 1.442695
    %v1455 = vpow.pop %v1454
    %v1456 = vmul.f32 %v1451, 1.442695
    %v1457 = vpow.pop %v1456
    %v1458 = vadd.f32 %v1453, 1.0
    %v1459 = vadd.f32 %v1455, 1.0
    %v1460 = vadd.f32 %v1457, 1.0
    %v1461 = vrcp.pop %v1458
    %v1462 = vmul.f32 %v1458, %v1461
    %v1463 = vsub.f32 1.0, %v1462
    %v1464 = vmul.f32 %v1461, %v1463
    %v1465 = vadd.f32 %v1461, %v1464
    %vm1466 = vweird.f32 %v1458
    %vm1467 = vweird.f32 %v1461
    %vm1468 = vmor %vm1466, %vm1467
    %v1469 = vsel %vm1468, %v1461, %v1465
    %v1470 = vand.u32 2147483647, %v1458
    %vm1471 = vcmp.eq.f32.partialorder %v1470, 8.507059e+37
    %v1472 = vand.u32 %v1458, 2147483648
    %v1473 = vor.u32 1.1754944e-38, %v1472
    %v1474 = vsel %vm1471, %v1473, %v1469
    %v1475 = vmul.f32 1.0, %v1474
    %v1476 = vrcp.pop %v1459
    %v1477 = vmul.f32 %v1459, %v1476
    %v1478 = vsub.f32 1.0, %v1477
    %v1479 = vmul.f32 %v1476, %v1478
    %v1480 = vadd.f32 %v1476, %v1479
    %vm1481 = vweird.f32 %v1459
    %vm1482 = vweird.f32 %v1476
    %vm1483 = vmor %vm1481, %vm1482
    %v1484 = vsel %vm1483, %v1476, %v1480
    %v1485 = vand.u32 2147483647, %v1459
    %vm1486 = vcmp.eq.f32.partialorder %v1485, 8.507059e+37
    %v1487 = vand.u32 %v1459, 2147483648
    %v1488 = vor.u32 1.1754944e-38, %v1487
    %v1489 = vsel %vm1486, %v1488, %v1484
    %v1490 = vmul.f32 1.0, %v1489
    %v1491 = vrcp.pop %v1460
    %v1492 = vmul.f32 %v1460, %v1491
    %v1493 = vsub.f32 1.0, %v1492
    %v1494 = vmul.f32 %v1491, %v1493
    %v1495 = vadd.f32 %v1491, %v1494
    %vm1496 = vweird.f32 %v1460
    %vm1497 = vweird.f32 %v1491
    %vm1498 = vmor %vm1496, %vm1497
    %v1499 = vsel %vm1498, %v1491, %v1495
    %v1500 = vand.u32 2147483647, %v1460
    %vm1501 = vcmp.eq.f32.partialorder %v1500, 8.507059e+37
    %v1502 = vand.u32 %v1460, 2147483648
    %v1503 = vor.u32 1.1754944e-38, %v1502
    %v1504 = vsel %vm1501, %v1503, %v1499
    %v1505 = vmul.f32 1.0, %v1504
    %v1506 = vtanh.pop %v1260
    %v1507 = vmul.f32 %v1490, 0.0
    %v1508 = vmul.f32 %v1475, %v1506
    %v1509 = vadd.f32 %v1507, %v1508
    %v1510 = vtanh.pop %v1509
    %v1511 = vmul.f32 %v1505, %v1510
    %1512 = vmatpush.msra.mxu0 %v1445
    %1513 = vmatpush.msra.mxu0 %v1441
    %1514 = vmatpush.msra.mxu0 %v1437
    %1515 = vmatpush.msra.mxu0 %v1433
    %1516 = vmatpush.msra.mxu0 %v1429
    %1517 = vmatpush.msra.mxu0 %v1425
    %1518 = vmatpush.msra.mxu0 %v1421
    %1519 = vmatpush.msra.mxu0 %v1417
    %1520 = vmatpush.msra.mxu0 %v1413
    %1521 = vmatpush.msra.mxu0 %v1409
    %1522 = vmatpush.msra.mxu0 %v1405
    %1523 = vmatpush.msra.mxu0 %v1401
    %1524 = vmatpush.msra.mxu0 %v1397
    %1525 = vmatpush.msra.mxu0 %v1393
    %1526 = vmatpush.msra.mxu0 %v1389
    %1527 = vmatpush.msra.mxu0 %v1385
    %1528 = vmatmul.f32.gmra.mxu0 %v1511
    %v1529 = vpop.f32.mrf.mxu0
    %v1530 = vadd.f32 0.0, %v1529
    %1531 = vdwg.mxu0
    %1532 = vmatpush.msra.mxu0 %v1446
    %1533 = vmatpush.msra.mxu0 %v1442
    %1534 = vmatpush.msra.mxu0 %v1438
    %1535 = vmatpush.msra.mxu0 %v1434
    %1536 = vmatpush.msra.mxu0 %v1430
    %1537 = vmatpush.msra.mxu0 %v1426
    %1538 = vmatpush.msra.mxu0 %v1422
    %1539 = vmatpush.msra.mxu0 %v1418
    %1540 = vmatpush.msra.mxu0 %v1414
    %1541 = vmatpush.msra.mxu0 %v1410
    %1542 = vmatpush.msra.mxu0 %v1406
    %1543 = vmatpush.msra.mxu0 %v1402
    %1544 = vmatpush.msra.mxu0 %v1398
    %1545 = vmatpush.msra.mxu0 %v1394
    %1546 = vmatpush.msra.mxu0 %v1390
    %1547 = vmatpush.msra.mxu0 %v1386
    %1548 = vmatmul.f32.gmra.mxu0 %v1511
    %v1549 = vpop.f32.mrf.mxu0
    %v1550 = vadd.f32 0.0, %v1549
    %1551 = vdwg.mxu0
    %1552 = vmatpush.msra.mxu0 %v1447
    %1553 = vmatpush.msra.mxu0 %v1443
    %1554 = vmatpush.msra.mxu0 %v1439
    %1555 = vmatpush.msra.mxu0 %v1435
    %1556 = vmatpush.msra.mxu0 %v1431
    %1557 = vmatpush.msra.mxu0 %v1427
    %1558 = vmatpush.msra.mxu0 %v1423
    %1559 = vmatpush.msra.mxu0 %v1419
    %1560 = vmatpush.msra.mxu0 %v1415
    %1561 = vmatpush.msra.mxu0 %v1411
    %1562 = vmatpush.msra.mxu0 %v1407
    %1563 = vmatpush.msra.mxu0 %v1403
    %1564 = vmatpush.msra.mxu0 %v1399
    %1565 = vmatpush.msra.mxu0 %v1395
    %1566 = vmatpush.msra.mxu0 %v1391
    %1567 = vmatpush.msra.mxu0 %v1387
    %1568 = vmatmul.f32.gmra.mxu0 %v1511
    %v1569 = vpop.f32.mrf.mxu0
    %v1570 = vadd.f32 0.0, %v1569
    %1571 = vdwg.mxu0
    %1572 = vmatpush.msra.mxu0 %v1448
    %1573 = vmatpush.msra.mxu0 %v1444
    %1574 = vmatpush.msra.mxu0 %v1440
    %1575 = vmatpush.msra.mxu0 %v1436
    %1576 = vmatpush.msra.mxu0 %v1432
    %1577 = vmatpush.msra.mxu0 %v1428
    %1578 = vmatpush.msra.mxu0 %v1424
    %1579 = vmatpush.msra.mxu0 %v1420
    %1580 = vmatpush.msra.mxu0 %v1416
    %1581 = vmatpush.msra.mxu0 %v1412
    %1582 = vmatpush.msra.mxu0 %v1408
    %1583 = vmatpush.msra.mxu0 %v1404
    %1584 = vmatpush.msra.mxu0 %v1400
    %1585 = vmatpush.msra.mxu0 %v1396
    %1586 = vmatpush.msra.mxu0 %v1392
    %1587 = vmatpush.msra.mxu0 %v1388
    %1588 = vmatmul.f32.gmra.mxu0 %v1511
    %v1589 = vpop.f32.mrf.mxu0
    %v1590 = vadd.f32 0.0, %v1589
    %1591 = vdwg.mxu0
    %v1592 = vadd.f32 %v1273, %v1530
    %v1593 = vadd.f32 %v1274, %v1550
    %v1594 = vadd.f32 %v1275, %v1570
    %v1595 = vadd.f32 %v1276, %v1590
    %v1596 = vxor.u32 %v1592, 2147483648
    %v1597 = vxor.u32 %v1593, 2147483648
    %v1598 = vxor.u32 %v1594, 2147483648
    %v1599 = vmul.f32 %v1596, 1.442695
    %v1600 = vpow.pop %v1599
    %v1601 = vmul.f32 %v1597, 1.442695
    %v1602 = vpow.pop %v1601
    %v1603 = vmul.f32 %v1598, 1.442695
    %v1604 = vpow.pop %v1603
    %v1605 = vadd.f32 %v1600, 1.0
    %v1606 = vadd.f32 %v1602, 1.0
    %v1607 = vadd.f32 %v1604, 1.0
    %v1608 = vrcp.pop %v1605
    %v1609 = vmul.f32 %v1605, %v1608
    %v1610 = vsub.f32 1.0, %v1609
    %v1611 = vmul.f32 %v1608, %v1610
    %v1612 = vadd.f32 %v1608, %v1611
    %vm1613 = vweird.f32 %v1605
    %vm1614 = vweird.f32 %v1608
    %vm1615 = vmor %vm1613, %vm1614
    %v1616 = vsel %vm1615, %v1608, %v1612
    %v1617 = vand.u32 2147483647, %v1605
    %vm1618 = vcmp.eq.f32.partialorder %v1617, 8.507059e+37
    %v1619 = vand.u32 %v1605, 2147483648
    %v1620 = vor.u32 1.1754944e-38, %v1619
    %v1621 = vsel %vm1618, %v1620, %v1616
    %v1622 = vmul.f32 1.0, %v1621
    %v1623 = vrcp.pop %v1606
    %v1624 = vmul.f32 %v1606, %v1623
    %v1625 = vsub.f32 1.0, %v1624
    %v1626 = vmul.f32 %v1623, %v1625
    %v1627 = vadd.f32 %v1623, %v1626
    %vm1628 = vweird.f32 %v1606
    %vm1629 = vweird.f32 %v1623
    %vm1630 = vmor %vm1628, %vm1629
    %v1631 = vsel %vm1630, %v1623, %v1627
    %v1632 = vand.u32 2147483647, %v1606
    %vm1633 = vcmp.eq.f32.partialorder %v1632, 8.507059e+37
    %v1634 = vand.u32 %v1606, 2147483648
    %v1635 = vor.u32 1.1754944e-38, %v1634
    %v1636 = vsel %vm1633, %v1635, %v1631
    %v1637 = vmul.f32 1.0, %v1636
    %v1638 = vrcp.pop %v1607
    %v1639 = vmul.f32 %v1607, %v1638
    %v1640 = vsub.f32 1.0, %v1639
    %v1641 = vmul.f32 %v1638, %v1640
    %v1642 = vadd.f32 %v1638, %v1641
    %vm1643 = vweird.f32 %v1607
    %vm1644 = vweird.f32 %v1638
    %vm1645 = vmor %vm1643, %vm1644
    %v1646 = vsel %vm1645, %v1638, %v1642
    %v1647 = vand.u32 2147483647, %v1607
    %vm1648 = vcmp.eq.f32.partialorder %v1647, 8.507059e+37
    %v1649 = vand.u32 %v1607, 2147483648
    %v1650 = vor.u32 1.1754944e-38, %v1649
    %v1651 = vsel %vm1648, %v1650, %v1646
    %v1652 = vmul.f32 1.0, %v1651
    %v1653 = vtanh.pop %v1595
    %v1654 = vmul.f32 %v1637, %v1509
    %v1655 = vmul.f32 %v1622, %v1653
    %v1656 = vadd.f32 %v1654, %v1655
    %v1657 = vtanh.pop %v1656
    %v1658 = vmul.f32 %v1652, %v1657
    %1659 = vmatpush.msra.mxu0 %v1445
    %1660 = vmatpush.msra.mxu0 %v1441
    %1661 = vmatpush.msra.mxu0 %v1437
    %1662 = vmatpush.msra.mxu0 %v1433
    %1663 = vmatpush.msra.mxu0 %v1429
    %1664 = vmatpush.msra.mxu0 %v1425
    %1665 = vmatpush.msra.mxu0 %v1421
    %1666 = vmatpush.msra.mxu0 %v1417
    %1667 = vmatpush.msra.mxu0 %v1413
    %1668 = vmatpush.msra.mxu0 %v1409
    %1669 = vmatpush.msra.mxu0 %v1405
    %1670 = vmatpush.msra.mxu0 %v1401
    %1671 = vmatpush.msra.mxu0 %v1397
    %1672 = vmatpush.msra.mxu0 %v1393
    %1673 = vmatpush.msra.mxu0 %v1389
    %1674 = vmatpush.msra.mxu0 %v1385
    %1675 = vmatmul.f32.gmra.mxu0 %v1658
    %v1676 = vpop.f32.mrf.mxu0
    %v1677 = vadd.f32 0.0, %v1676
    %1678 = vdwg.mxu0
    %1679 = vmatpush.msra.mxu0 %v1446
    %1680 = vmatpush.msra.mxu0 %v1442
    %1681 = vmatpush.msra.mxu0 %v1438
    %1682 = vmatpush.msra.mxu0 %v1434
    %1683 = vmatpush.msra.mxu0 %v1430
    %1684 = vmatpush.msra.mxu0 %v1426
    %1685 = vmatpush.msra.mxu0 %v1422
    %1686 = vmatpush.msra.mxu0 %v1418
    %1687 = vmatpush.msra.mxu0 %v1414
    %1688 = vmatpush.msra.mxu0 %v1410
    %1689 = vmatpush.msra.mxu0 %v1406
    %1690 = vmatpush.msra.mxu0 %v1402
    %1691 = vmatpush.msra.mxu0 %v1398
    %1692 = vmatpush.msra.mxu0 %v1394
    %1693 = vmatpush.msra.mxu0 %v1390
    %1694 = vmatpush.msra.mxu0 %v1386
    %1695 = vmatmul.f32.gmra.mxu0 %v1658
    %v1696 = vpop.f32.mrf.mxu0
    %v1697 = vadd.f32 0.0, %v1696
    %1698 = vdwg.mxu0
    %1699 = vmatpush.msra.mxu0 %v1447
    %1700 = vmatpush.msra.mxu0 %v1443
    %1701 = vmatpush.msra.mxu0 %v1439
    %1702 = vmatpush.msra.mxu0 %v1435
    %1703 = vmatpush.msra.mxu0 %v1431
    %1704 = vmatpush.msra.mxu0 %v1427
    %1705 = vmatpush.msra.mxu0 %v1423
    %1706 = vmatpush.msra.mxu0 %v1419
    %1707 = vmatpush.msra.mxu0 %v1415
    %1708 = vmatpush.msra.mxu0 %v1411
    %1709 = vmatpush.msra.mxu0 %v1407
    %1710 = vmatpush.msra.mxu0 %v1403
    %1711 = vmatpush.msra.mxu0 %v1399
    %1712 = vmatpush.msra.mxu0 %v1395
    %1713 = vmatpush.msra.mxu0 %v1391
    %1714 = vmatpush.msra.mxu0 %v1387
    %1715 = vmatmul.f32.gmra.mxu0 %v1658
    %v1716 = vpop.f32.mrf.mxu0
    %v1717 = vadd.f32 0.0, %v1716
    %1718 = vdwg.mxu0
    %1719 = vmatpush.msra.mxu0 %v1448
    %1720 = vmatpush.msra.mxu0 %v1444
    %1721 = vmatpush.msra.mxu0 %v1440
    %1722 = vmatpush.msra.mxu0 %v1436
    %1723 = vmatpush.msra.mxu0 %v1432
    %1724 = vmatpush.msra.mxu0 %v1428
    %1725 = vmatpush.msra.mxu0 %v1424
    %1726 = vmatpush.msra.mxu0 %v1420
    %1727 = vmatpush.msra.mxu0 %v1416
    %1728 = vmatpush.msra.mxu0 %v1412
    %1729 = vmatpush.msra.mxu0 %v1408
    %1730 = vmatpush.msra.mxu0 %v1404
    %1731 = vmatpush.msra.mxu0 %v1400
    %1732 = vmatpush.msra.mxu0 %v1396
    %1733 = vmatpush.msra.mxu0 %v1392
    %1734 = vmatpush.msra.mxu0 %v1388
    %1735 = vmatmul.f32.gmra.mxu0 %v1658
    %v1736 = vpop.f32.mrf.mxu0
    %v1737 = vadd.f32 0.0, %v1736
    %1738 = vdwg.mxu0
    %v1739 = vadd.f32 %v1293, %v1677
    %v1740 = vadd.f32 %v1294, %v1697
    %v1741 = vadd.f32 %v1295, %v1717
    %v1742 = vadd.f32 %v1296, %v1737
    %v1743 = vxor.u32 %v1739, 2147483648
    %v1744 = vxor.u32 %v1740, 2147483648
    %v1745 = vxor.u32 %v1741, 2147483648
    %v1746 = vmul.f32 %v1743, 1.442695
    %v1747 = vpow.pop %v1746
    %v1748 = vmul.f32 %v1744, 1.442695
    %v1749 = vpow.pop %v1748
    %v1750 = vmul.f32 %v1745, 1.442695
    %v1751 = vpow.pop %v1750
    %v1752 = vadd.f32 %v1747, 1.0
    %v1753 = vadd.f32 %v1749, 1.0
    %v1754 = vadd.f32 %v1751, 1.0
    %v1755 = vrcp.pop %v1752
    %v1756 = vmul.f32 %v1752, %v1755
    %v1757 = vsub.f32 1.0, %v1756
    %v1758 = vmul.f32 %v1755, %v1757
    %v1759 = vadd.f32 %v1755, %v1758
    %vm1760 = vweird.f32 %v1752
    %vm1761 = vweird.f32 %v1755
    %vm1762 = vmor %vm1760, %vm1761
    %v1763 = vsel %vm1762, %v1755, %v1759
    %v1764 = vand.u32 2147483647, %v1752
    %vm1765 = vcmp.eq.f32.partialorder %v1764, 8.507059e+37
    %v1766 = vand.u32 %v1752, 2147483648
    %v1767 = vor.u32 1.1754944e-38, %v1766
    %v1768 = vsel %vm1765, %v1767, %v1763
    %v1769 = vmul.f32 1.0, %v1768
    %v1770 = vrcp.pop %v1753
    %v1771 = vmul.f32 %v1753, %v1770
    %v1772 = vsub.f32 1.0, %v1771
    %v1773 = vmul.f32 %v1770, %v1772
    %v1774 = vadd.f32 %v1770, %v1773
    %vm1775 = vweird.f32 %v1753
    %vm1776 = vweird.f32 %v1770
    %vm1777 = vmor %vm1775, %vm1776
    %v1778 = vsel %vm1777, %v1770, %v1774
    %v1779 = vand.u32 2147483647, %v1753
    %vm1780 = vcmp.eq.f32.partialorder %v1779, 8.507059e+37
    %v1781 = vand.u32 %v1753, 2147483648
    %v1782 = vor.u32 1.1754944e-38, %v1781
    %v1783 = vsel %vm1780, %v1782, %v1778
    %v1784 = vmul.f32 1.0, %v1783
    %v1785 = vrcp.pop %v1754
    %v1786 = vmul.f32 %v1754, %v1785
    %v1787 = vsub.f32 1.0, %v1786
    %v1788 = vmul.f32 %v1785, %v1787
    %v1789 = vadd.f32 %v1785, %v1788
    %vm1790 = vweird.f32 %v1754
    %vm1791 = vweird.f32 %v1785
    %vm1792 = vmor %vm1790, %vm1791
    %v1793 = vsel %vm1792, %v1785, %v1789
    %v1794 = vand.u32 2147483647, %v1754
    %vm1795 = vcmp.eq.f32.partialorder %v1794, 8.507059e+37
    %v1796 = vand.u32 %v1754, 2147483648
    %v1797 = vor.u32 1.1754944e-38, %v1796
    %v1798 = vsel %vm1795, %v1797, %v1793
    %v1799 = vmul.f32 1.0, %v1798
    %v1800 = vtanh.pop %v1742
    %v1801 = vmul.f32 %v1784, %v1656
    %v1802 = vmul.f32 %v1769, %v1800
    %v1803 = vadd.f32 %v1801, %v1802
    %v1804 = vtanh.pop %v1803
    %v1805 = vmul.f32 %v1799, %v1804
    %1806 = vmatpush.msra.mxu0 %v1445
    %1807 = vmatpush.msra.mxu0 %v1441
    %1808 = vmatpush.msra.mxu0 %v1437
    %1809 = vmatpush.msra.mxu0 %v1433
    %1810 = vmatpush.msra.mxu0 %v1429
    %1811 = vmatpush.msra.mxu0 %v1425
    %1812 = vmatpush.msra.mxu0 %v1421
    %1813 = vmatpush.msra.mxu0 %v1417
    %1814 = vmatpush.msra.mxu0 %v1413
    %1815 = vmatpush.msra.mxu0 %v1409
    %1816 = vmatpush.msra.mxu0 %v1405
    %1817 = vmatpush.msra.mxu0 %v1401
    %1818 = vmatpush.msra.mxu0 %v1397
    %1819 = vmatpush.msra.mxu0 %v1393
    %1820 = vmatpush.msra.mxu0 %v1389
    %1821 = vmatpush.msra.mxu0 %v1385
    %1822 = vmatmul.f32.gmra.mxu0 %v1805
    %v1823 = vpop.f32.mrf.mxu0
    %v1824 = vadd.f32 0.0, %v1823
    %1825 = vdwg.mxu0
    %1826 = vmatpush.msra.mxu0 %v1446
    %1827 = vmatpush.msra.mxu0 %v1442
    %1828 = vmatpush.msra.mxu0 %v1438
    %1829 = vmatpush.msra.mxu0 %v1434
    %1830 = vmatpush.msra.mxu0 %v1430
    %1831 = vmatpush.msra.mxu0 %v1426
    %1832 = vmatpush.msra.mxu0 %v1422
    %1833 = vmatpush.msra.mxu0 %v1418
    %1834 = vmatpush.msra.mxu0 %v1414
    %1835 = vmatpush.msra.mxu0 %v1410
    %1836 = vmatpush.msra.mxu0 %v1406
    %1837 = vmatpush.msra.mxu0 %v1402
    %1838 = vmatpush.msra.mxu0 %v1398
    %1839 = vmatpush.msra.mxu0 %v1394
    %1840 = vmatpush.msra.mxu0 %v1390
    %1841 = vmatpush.msra.mxu0 %v1386
    %1842 = vmatmul.f32.gmra.mxu0 %v1805
    %v1843 = vpop.f32.mrf.mxu0
    %v1844 = vadd.f32 0.0, %v1843
    %1845 = vdwg.mxu0
    %1846 = vmatpush.msra.mxu0 %v1447
    %1847 = vmatpush.msra.mxu0 %v1443
    %1848 = vmatpush.msra.mxu0 %v1439
    %1849 = vmatpush.msra.mxu0 %v1435
    %1850 = vmatpush.msra.mxu0 %v1431
    %1851 = vmatpush.msra.mxu0 %v1427
    %1852 = vmatpush.msra.mxu0 %v1423
    %1853 = vmatpush.msra.mxu0 %v1419
    %1854 = vmatpush.msra.mxu0 %v1415
    %1855 = vmatpush.msra.mxu0 %v1411
    %1856 = vmatpush.msra.mxu0 %v1407
    %1857 = vmatpush.msra.mxu0 %v1403
    %1858 = vmatpush.msra.mxu0 %v1399
    %1859 = vmatpush.msra.mxu0 %v1395
    %1860 = vmatpush.msra.mxu0 %v1391
    %1861 = vmatpush.msra.mxu0 %v1387
    %1862 = vmatmul.f32.gmra.mxu0 %v1805
    %v1863 = vpop.f32.mrf.mxu0
    %v1864 = vadd.f32 0.0, %v1863
    %1865 = vdwg.mxu0
    %1866 = vmatpush.msra.mxu0 %v1448
    %1867 = vmatpush.msra.mxu0 %v1444
    %1868 = vmatpush.msra.mxu0 %v1440
    %1869 = vmatpush.msra.mxu0 %v1436
    %1870 = vmatpush.msra.mxu0 %v1432
    %1871 = vmatpush.msra.mxu0 %v1428
    %1872 = vmatpush.msra.mxu0 %v1424
    %1873 = vmatpush.msra.mxu0 %v1420
    %1874 = vmatpush.msra.mxu0 %v1416
    %1875 = vmatpush.msra.mxu0 %v1412
    %1876 = vmatpush.msra.mxu0 %v1408
    %1877 = vmatpush.msra.mxu0 %v1404
    %1878 = vmatpush.msra.mxu0 %v1400
    %1879 = vmatpush.msra.mxu0 %v1396
    %1880 = vmatpush.msra.mxu0 %v1392
    %1881 = vmatpush.msra.mxu0 %v1388
    %1882 = vmatmul.f32.gmra.mxu0 %v1805
    %v1883 = vpop.f32.mrf.mxu0
    %v1884 = vadd.f32 0.0, %v1883
    %1885 = vdwg.mxu0
    %v1886 = vadd.f32 %v1313, %v1824
    %v1887 = vadd.f32 %v1314, %v1844
    %v1888 = vadd.f32 %v1315, %v1864
    %v1889 = vadd.f32 %v1316, %v1884
    %v1890 = vxor.u32 %v1886, 2147483648
    %v1891 = vxor.u32 %v1887, 2147483648
    %v1892 = vxor.u32 %v1888, 2147483648
    %v1893 = vmul.f32 %v1890, 1.442695
    %v1894 = vpow.pop %v1893
    %v1895 = vmul.f32 %v1891, 1.442695
    %v1896 = vpow.pop %v1895
    %v1897 = vmul.f32 %v1892, 1.442695
    %v1898 = vpow.pop %v1897
    %v1899 = vadd.f32 %v1894, 1.0
    %v1900 = vadd.f32 %v1896, 1.0
    %v1901 = vadd.f32 %v1898, 1.0
    %v1902 = vrcp.pop %v1899
    %v1903 = vmul.f32 %v1899, %v1902
    %v1904 = vsub.f32 1.0, %v1903
    %v1905 = vmul.f32 %v1902, %v1904
    %v1906 = vadd.f32 %v1902, %v1905
    %vm1907 = vweird.f32 %v1899
    %vm1908 = vweird.f32 %v1902
    %vm1909 = vmor %vm1907, %vm1908
    %v1910 = vsel %vm1909, %v1902, %v1906
    %v1911 = vand.u32 2147483647, %v1899
    %vm1912 = vcmp.eq.f32.partialorder %v1911, 8.507059e+37
    %v1913 = vand.u32 %v1899, 2147483648
    %v1914 = vor.u32 1.1754944e-38, %v1913
    %v1915 = vsel %vm1912, %v1914, %v1910
    %v1916 = vmul.f32 1.0, %v1915
    %v1917 = vrcp.pop %v1900
    %v1918 = vmul.f32 %v1900, %v1917
    %v1919 = vsub.f32 1.0, %v1918
    %v1920 = vmul.f32 %v1917, %v1919
    %v1921 = vadd.f32 %v1917, %v1920
    %vm1922 = vweird.f32 %v1900
    %vm1923 = vweird.f32 %v1917
    %vm1924 = vmor %vm1922, %vm1923
    %v1925 = vsel %vm1924, %v1917, %v1921
    %v1926 = vand.u32 2147483647, %v1900
    %vm1927 = vcmp.eq.f32.partialorder %v1926, 8.507059e+37
    %v1928 = vand.u32 %v1900, 2147483648
    %v1929 = vor.u32 1.1754944e-38, %v1928
    %v1930 = vsel %vm1927, %v1929, %v1925
    %v1931 = vmul.f32 1.0, %v1930
    %v1932 = vrcp.pop %v1901
    %v1933 = vmul.f32 %v1901, %v1932
    %v1934 = vsub.f32 1.0, %v1933
    %v1935 = vmul.f32 %v1932, %v1934
    %v1936 = vadd.f32 %v1932, %v1935
    %vm1937 = vweird.f32 %v1901
    %vm1938 = vweird.f32 %v1932
    %vm1939 = vmor %vm1937, %vm1938
    %v1940 = vsel %vm1939, %v1932, %v1936
    %v1941 = vand.u32 2147483647, %v1901
    %vm1942 = vcmp.eq.f32.partialorder %v1941, 8.507059e+37
    %v1943 = vand.u32 %v1901, 2147483648
    %v1944 = vor.u32 1.1754944e-38, %v1943
    %v1945 = vsel %vm1942, %v1944, %v1940
    %v1946 = vmul.f32 1.0, %v1945
    %v1947 = vtanh.pop %v1889
    %v1948 = vmul.f32 %v1931, %v1803
    %v1949 = vmul.f32 %v1916, %v1947
    %v1950 = vadd.f32 %v1948, %v1949
    %v1951 = vtanh.pop %v1950
    %v1952 = vmul.f32 %v1946, %v1951
    %1953 = vmatpush.msra.mxu0 %v1445
    %1954 = vmatpush.msra.mxu0 %v1441
    %1955 = vmatpush.msra.mxu0 %v1437
    %1956 = vmatpush.msra.mxu0 %v1433
    %1957 = vmatpush.msra.mxu0 %v1429
    %1958 = vmatpush.msra.mxu0 %v1425
    %1959 = vmatpush.msra.mxu0 %v1421
    %1960 = vmatpush.msra.mxu0 %v1417
    %1961 = vmatpush.msra.mxu0 %v1413
    %1962 = vmatpush.msra.mxu0 %v1409
    %1963 = vmatpush.msra.mxu0 %v1405
    %1964 = vmatpush.msra.mxu0 %v1401
    %1965 = vmatpush.msra.mxu0 %v1397
    %1966 = vmatpush.msra.mxu0 %v1393
    %1967 = vmatpush.msra.mxu0 %v1389
    %1968 = vmatpush.msra.mxu0 %v1385
    %1969 = vmatmul.f32.gmra.mxu0 %v1952
    %v1970 = vpop.f32.mrf.mxu0
    %v1971 = vadd.f32 0.0, %v1970
    %1972 = vdwg.mxu0
    %1973 = vmatpush.msra.mxu0 %v1446
    %1974 = vmatpush.msra.mxu0 %v1442
    %1975 = vmatpush.msra.mxu0 %v1438
    %1976 = vmatpush.msra.mxu0 %v1434
    %1977 = vmatpush.msra.mxu0 %v1430
    %1978 = vmatpush.msra.mxu0 %v1426
    %1979 = vmatpush.msra.mxu0 %v1422
    %1980 = vmatpush.msra.mxu0 %v1418
    %1981 = vmatpush.msra.mxu0 %v1414
    %1982 = vmatpush.msra.mxu0 %v1410
    %1983 = vmatpush.msra.mxu0 %v1406
    %1984 = vmatpush.msra.mxu0 %v1402
    %1985 = vmatpush.msra.mxu0 %v1398
    %1986 = vmatpush.msra.mxu0 %v1394
    %1987 = vmatpush.msra.mxu0 %v1390
    %1988 = vmatpush.msra.mxu0 %v1386
    %1989 = vmatmul.f32.gmra.mxu0 %v1952
    %v1990 = vpop.f32.mrf.mxu0
    %v1991 = vadd.f32 0.0, %v1990
    %1992 = vdwg.mxu0
    %1993 = vmatpush.msra.mxu0 %v1447
    %1994 = vmatpush.msra.mxu0 %v1443
    %1995 = vmatpush.msra.mxu0 %v1439
    %1996 = vmatpush.msra.mxu0 %v1435
    %1997 = vmatpush.msra.mxu0 %v1431
    %1998 = vmatpush.msra.mxu0 %v1427
    %1999 = vmatpush.msra.mxu0 %v1423
    %2000 = vmatpush.msra.mxu0 %v1419
    %2001 = vmatpush.msra.mxu0 %v1415
    %2002 = vmatpush.msra.mxu0 %v1411
    %2003 = vmatpush.msra.mxu0 %v1407
    %2004 = vmatpush.msra.mxu0 %v1403
    %2005 = vmatpush.msra.mxu0 %v1399
    %2006 = vmatpush.msra.mxu0 %v1395
    %2007 = vmatpush.msra.mxu0 %v1391
    %2008 = vmatpush.msra.mxu0 %v1387
    %2009 = vmatmul.f32.gmra.mxu0 %v1952
    %v2010 = vpop.f32.mrf.mxu0
    %v2011 = vadd.f32 0.0, %v2010
    %2012 = vdwg.mxu0
    %2013 = vmatpush.msra.mxu0 %v1448
    %2014 = vmatpush.msra.mxu0 %v1444
    %2015 = vmatpush.msra.mxu0 %v1440
    %2016 = vmatpush.msra.mxu0 %v1436
    %2017 = vmatpush.msra.mxu0 %v1432
    %2018 = vmatpush.msra.mxu0 %v1428
    %2019 = vmatpush.msra.mxu0 %v1424
    %2020 = vmatpush.msra.mxu0 %v1420
    %2021 = vmatpush.msra.mxu0 %v1416
    %2022 = vmatpush.msra.mxu0 %v1412
    %2023 = vmatpush.msra.mxu0 %v1408
    %2024 = vmatpush.msra.mxu0 %v1404
    %2025 = vmatpush.msra.mxu0 %v1400
    %2026 = vmatpush.msra.mxu0 %v1396
    %2027 = vmatpush.msra.mxu0 %v1392
    %2028 = vmatpush.msra.mxu0 %v1388
    %2029 = vmatmul.f32.gmra.mxu0 %v1952
    %v2030 = vpop.f32.mrf.mxu0
    %v2031 = vadd.f32 0.0, %v2030
    %2032 = vdwg.mxu0
    %v2033 = vadd.f32 %v1333, %v1971
    %v2034 = vadd.f32 %v1334, %v1991
    %v2035 = vadd.f32 %v1335, %v2011
    %v2036 = vadd.f32 %v1336, %v2031
    %v2037 = vxor.u32 %v2033, 2147483648
    %v2038 = vxor.u32 %v2034, 2147483648
    %v2039 = vxor.u32 %v2035, 2147483648
    %v2040 = vmul.f32 %v2037, 1.442695
    %v2041 = vpow.pop %v2040
    %v2042 = vmul.f32 %v2038, 1.442695
    %v2043 = vpow.pop %v2042
    %v2044 = vmul.f32 %v2039, 1.442695
    %v2045 = vpow.pop %v2044
    %v2046 = vadd.f32 %v2041, 1.0
    %v2047 = vadd.f32 %v2043, 1.0
    %v2048 = vadd.f32 %v2045, 1.0
    %v2049 = vrcp.pop %v2046
    %v2050 = vmul.f32 %v2046, %v2049
    %v2051 = vsub.f32 1.0, %v2050
    %v2052 = vmul.f32 %v2049, %v2051
    %v2053 = vadd.f32 %v2049, %v2052
    %vm2054 = vweird.f32 %v2046
    %vm2055 = vweird.f32 %v2049
    %vm2056 = vmor %vm2054, %vm2055
    %v2057 = vsel %vm2056, %v2049, %v2053
    %v2058 = vand.u32 2147483647, %v2046
    %vm2059 = vcmp.eq.f32.partialorder %v2058, 8.507059e+37
    %v2060 = vand.u32 %v2046, 2147483648
    %v2061 = vor.u32 1.1754944e-38, %v2060
    %v2062 = vsel %vm2059, %v2061, %v2057
    %v2063 = vmul.f32 1.0, %v2062
    %v2064 = vrcp.pop %v2047
    %v2065 = vmul.f32 %v2047, %v2064
    %v2066 = vsub.f32 1.0, %v2065
    %v2067 = vmul.f32 %v2064, %v2066
    %v2068 = vadd.f32 %v2064, %v2067
    %vm2069 = vweird.f32 %v2047
    %vm2070 = vweird.f32 %v2064
    %vm2071 = vmor %vm2069, %vm2070
    %v2072 = vsel %vm2071, %v2064, %v2068
    %v2073 = vand.u32 2147483647, %v2047
    %vm2074 = vcmp.eq.f32.partialorder %v2073, 8.507059e+37
    %v2075 = vand.u32 %v2047, 2147483648
    %v2076 = vor.u32 1.1754944e-38, %v2075
    %v2077 = vsel %vm2074, %v2076, %v2072
    %v2078 = vmul.f32 1.0, %v2077
    %v2079 = vrcp.pop %v2048
    %v2080 = vmul.f32 %v2048, %v2079
    %v2081 = vsub.f32 1.0, %v2080
    %v2082 = vmul.f32 %v2079, %v2081
    %v2083 = vadd.f32 %v2079, %v2082
    %vm2084 = vweird.f32 %v2048
    %vm2085 = vweird.f32 %v2079
    %vm2086 = vmor %vm2084, %vm2085
    %v2087 = vsel %vm2086, %v2079, %v2083
    %v2088 = vand.u32 2147483647, %v2048
    %vm2089 = vcmp.eq.f32.partialorder %v2088, 8.507059e+37
    %v2090 = vand.u32 %v2048, 2147483648
    %v2091 = vor.u32 1.1754944e-38, %v2090
    %v2092 = vsel %vm2089, %v2091, %v2087
    %v2093 = vmul.f32 1.0, %v2092
    %v2094 = vtanh.pop %v2036
    %v2095 = vmul.f32 %v2078, %v1950
    %v2096 = vmul.f32 %v2063, %v2094
    %v2097 = vadd.f32 %v2095, %v2096
    %v2098 = vtanh.pop %v2097
    %v2099 = vmul.f32 %v2093, %v2098
    %2100 = vmatpush.msra.mxu0 %v1445
    %2101 = vmatpush.msra.mxu0 %v1441
    %2102 = vmatpush.msra.mxu0 %v1437
    %2103 = vmatpush.msra.mxu0 %v1433
    %2104 = vmatpush.msra.mxu0 %v1429
    %2105 = vmatpush.msra.mxu0 %v1425
    %2106 = vmatpush.msra.mxu0 %v1421
    %2107 = vmatpush.msra.mxu0 %v1417
    %2108 = vmatpush.msra.mxu0 %v1413
    %2109 = vmatpush.msra.mxu0 %v1409
    %2110 = vmatpush.msra.mxu0 %v1405
    %2111 = vmatpush.msra.mxu0 %v1401
    %2112 = vmatpush.msra.mxu0 %v1397
    %2113 = vmatpush.msra.mxu0 %v1393
    %2114 = vmatpush.msra.mxu0 %v1389
    %2115 = vmatpush.msra.mxu0 %v1385
    %2116 = vmatmul.f32.gmra.mxu0 %v2099
    %v2117 = vpop.f32.mrf.mxu0
    %v2118 = vadd.f32 0.0, %v2117
    %2119 = vdwg.mxu0
    %2120 = vmatpush.msra.mxu0 %v1446
    %2121 = vmatpush.msra.mxu0 %v1442
    %2122 = vmatpush.msra.mxu0 %v1438
    %2123 = vmatpush.msra.mxu0 %v1434
    %2124 = vmatpush.msra.mxu0 %v1430
    %2125 = vmatpush.msra.mxu0 %v1426
    %2126 = vmatpush.msra.mxu0 %v1422
    %2127 = vmatpush.msra.mxu0 %v1418
    %2128 = vmatpush.msra.mxu0 %v1414
    %2129 = vmatpush.msra.mxu0 %v1410
    %2130 = vmatpush.msra.mxu0 %v1406
    %2131 = vmatpush.msra.mxu0 %v1402
    %2132 = vmatpush.msra.mxu0 %v1398
    %2133 = vmatpush.msra.mxu0 %v1394
    %2134 = vmatpush.msra.mxu0 %v1390
    %2135 = vmatpush.msra.mxu0 %v1386
    %2136 = vmatmul.f32.gmra.mxu0 %v2099
    %v2137 = vpop.f32.mrf.mxu0
    %v2138 = vadd.f32 0.0, %v2137
    %2139 = vdwg.mxu0
    %2140 = vmatpush.msra.mxu0 %v1447
    %2141 = vmatpush.msra.mxu0 %v1443
    %2142 = vmatpush.msra.mxu0 %v1439
    %2143 = vmatpush.msra.mxu0 %v1435
    %2144 = vmatpush.msra.mxu0 %v1431
    %2145 = vmatpush.msra.mxu0 %v1427
    %2146 = vmatpush.msra.mxu0 %v1423
    %2147 = vmatpush.msra.mxu0 %v1419
    %2148 = vmatpush.msra.mxu0 %v1415
    %2149 = vmatpush.msra.mxu0 %v1411
    %2150 = vmatpush.msra.mxu0 %v1407
    %2151 = vmatpush.msra.mxu0 %v1403
    %2152 = vmatpush.msra.mxu0 %v1399
    %2153 = vmatpush.msra.mxu0 %v1395
    %2154 = vmatpush.msra.mxu0 %v1391
    %2155 = vmatpush.msra.mxu0 %v1387
    %2156 = vmatmul.f32.gmra.mxu0 %v2099
    %v2157 = vpop.f32.mrf.mxu0
    %v2158 = vadd.f32 0.0, %v2157
    %2159 = vdwg.mxu0
    %2160 = vmatpush.msra.mxu0 %v1448
    %2161 = vmatpush.msra.mxu0 %v1444
    %2162 = vmatpush.msra.mxu0 %v1440
    %2163 = vmatpush.msra.mxu0 %v1436
    %2164 = vmatpush.msra.mxu0 %v1432
    %2165 = vmatpush.msra.mxu0 %v1428
    %2166 = vmatpush.msra.mxu0 %v1424
    %2167 = vmatpush.msra.mxu0 %v1420
    %2168 = vmatpush.msra.mxu0 %v1416
    %2169 = vmatpush.msra.mxu0 %v1412
    %2170 = vmatpush.msra.mxu0 %v1408
    %2171 = vmatpush.msra.mxu0 %v1404
    %2172 = vmatpush.msra.mxu0 %v1400
    %2173 = vmatpush.msra.mxu0 %v1396
    %2174 = vmatpush.msra.mxu0 %v1392
    %2175 = vmatpush.msra.mxu0 %v1388
    %2176 = vmatmul.f32.gmra.mxu0 %v2099
    %v2177 = vpop.f32.mrf.mxu0
    %v2178 = vadd.f32 0.0, %v2177
    %2179 = vdwg.mxu0
    %v2180 = vadd.f32 %v1353, %v2118
    %v2181 = vadd.f32 %v1354, %v2138
    %v2182 = vadd.f32 %v1355, %v2158
    %v2183 = vadd.f32 %v1356, %v2178
    %v2184 = vxor.u32 %v2180, 2147483648
    %v2185 = vxor.u32 %v2181, 2147483648
    %v2186 = vxor.u32 %v2182, 2147483648
    %v2187 = vmul.f32 %v2184, 1.442695
    %v2188 = vpow.pop %v2187
    %v2189 = vmul.f32 %v2185, 1.442695
    %v2190 = vpow.pop %v2189
    %v2191 = vmul.f32 %v2186, 1.442695
    %v2192 = vpow.pop %v2191
    %v2193 = vadd.f32 %v2188, 1.0
    %v2194 = vadd.f32 %v2190, 1.0
    %v2195 = vadd.f32 %v2192, 1.0
    %v2196 = vrcp.pop %v2193
    %v2197 = vmul.f32 %v2193, %v2196
    %v2198 = vsub.f32 1.0, %v2197
    %v2199 = vmul.f32 %v2196, %v2198
    %v2200 = vadd.f32 %v2196, %v2199
    %vm2201 = vweird.f32 %v2193
    %vm2202 = vweird.f32 %v2196
    %vm2203 = vmor %vm2201, %vm2202
    %v2204 = vsel %vm2203, %v2196, %v2200
    %v2205 = vand.u32 2147483647, %v2193
    %vm2206 = vcmp.eq.f32.partialorder %v2205, 8.507059e+37
    %v2207 = vand.u32 %v2193, 2147483648
    %v2208 = vor.u32 1.1754944e-38, %v2207
    %v2209 = vsel %vm2206, %v2208, %v2204
    %v2210 = vmul.f32 1.0, %v2209
    %v2211 = vrcp.pop %v2194
    %v2212 = vmul.f32 %v2194, %v2211
    %v2213 = vsub.f32 1.0, %v2212
    %v2214 = vmul.f32 %v2211, %v2213
    %v2215 = vadd.f32 %v2211, %v2214
    %vm2216 = vweird.f32 %v2194
    %vm2217 = vweird.f32 %v2211
    %vm2218 = vmor %vm2216, %vm2217
    %v2219 = vsel %vm2218, %v2211, %v2215
    %v2220 = vand.u32 2147483647, %v2194
    %vm2221 = vcmp.eq.f32.partialorder %v2220, 8.507059e+37
    %v2222 = vand.u32 %v2194, 2147483648
    %v2223 = vor.u32 1.1754944e-38, %v2222
    %v2224 = vsel %vm2221, %v2223, %v2219
    %v2225 = vmul.f32 1.0, %v2224
    %v2226 = vrcp.pop %v2195
    %v2227 = vmul.f32 %v2195, %v2226
    %v2228 = vsub.f32 1.0, %v2227
    %v2229 = vmul.f32 %v2226, %v2228
    %v2230 = vadd.f32 %v2226, %v2229
    %vm2231 = vweird.f32 %v2195
    %vm2232 = vweird.f32 %v2226
    %vm2233 = vmor %vm2231, %vm2232
    %v2234 = vsel %vm2233, %v2226, %v2230
    %v2235 = vand.u32 2147483647, %v2195
    %vm2236 = vcmp.eq.f32.partialorder %v2235, 8.507059e+37
    %v2237 = vand.u32 %v2195, 2147483648
    %v2238 = vor.u32 1.1754944e-38, %v2237
    %v2239 = vsel %vm2236, %v2238, %v2234
    %v2240 = vmul.f32 1.0, %v2239
    %v2241 = vtanh.pop %v2183
    %v2242 = vmul.f32 %v2225, %v2097
    %v2243 = vmul.f32 %v2210, %v2241
    %v2244 = vadd.f32 %v2242, %v2243
    %v2245 = vtanh.pop %v2244
    %v2246 = vmul.f32 %v2240, %v2245
    %v2247 = vxor.u32 %v1381, 2147483648
    %v2248 = vxor.u32 %v1382, 2147483648
    %v2249 = vxor.u32 %v1383, 2147483648
    %v2250 = vmul.f32 %v2247, 1.442695
    %v2251 = vpow.pop %v2250
    %v2252 = vmul.f32 %v2248, 1.442695
    %v2253 = vpow.pop %v2252
    %v2254 = vmul.f32 %v2249, 1.442695
    %v2255 = vpow.pop %v2254
    %v2256 = vadd.f32 %v2251, 1.0
    %v2257 = vadd.f32 %v2253, 1.0
    %v2258 = vadd.f32 %v2255, 1.0
    %v2259 = vrcp.pop %v2256
    %v2260 = vmul.f32 %v2256, %v2259
    %v2261 = vsub.f32 1.0, %v2260
    %v2262 = vmul.f32 %v2259, %v2261
    %v2263 = vadd.f32 %v2259, %v2262
    %vm2264 = vweird.f32 %v2256
    %vm2265 = vweird.f32 %v2259
    %vm2266 = vmor %vm2264, %vm2265
    %v2267 = vsel %vm2266, %v2259, %v2263
    %v2268 = vand.u32 2147483647, %v2256
    %vm2269 = vcmp.eq.f32.partialorder %v2268, 8.507059e+37
    %v2270 = vand.u32 %v2256, 2147483648
    %v2271 = vor.u32 1.1754944e-38, %v2270
    %v2272 = vsel %vm2269, %v2271, %v2267
    %v2273 = vmul.f32 1.0, %v2272
    %v2274 = vrcp.pop %v2257
    %v2275 = vmul.f32 %v2257, %v2274
    %v2276 = vsub.f32 1.0, %v2275
    %v2277 = vmul.f32 %v2274, %v2276
    %v2278 = vadd.f32 %v2274, %v2277
    %vm2279 = vweird.f32 %v2257
    %vm2280 = vweird.f32 %v2274
    %vm2281 = vmor %vm2279, %vm2280
    %v2282 = vsel %vm2281, %v2274, %v2278
    %v2283 = vand.u32 2147483647, %v2257
    %vm2284 = vcmp.eq.f32.partialorder %v2283, 8.507059e+37
    %v2285 = vand.u32 %v2257, 2147483648
    %v2286 = vor.u32 1.1754944e-38, %v2285
    %v2287 = vsel %vm2284, %v2286, %v2282
    %v2288 = vmul.f32 1.0, %v2287
    %v2289 = vrcp.pop %v2258
    %v2290 = vmul.f32 %v2258, %v2289
    %v2291 = vsub.f32 1.0, %v2290
    %v2292 = vmul.f32 %v2289, %v2291
    %v2293 = vadd.f32 %v2289, %v2292
    %vm2294 = vweird.f32 %v2258
    %vm2295 = vweird.f32 %v2289
    %vm2296 = vmor %vm2294, %vm2295
    %v2297 = vsel %vm2296, %v2289, %v2293
    %v2298 = vand.u32 2147483647, %v2258
    %vm2299 = vcmp.eq.f32.partialorder %v2298, 8.507059e+37
    %v2300 = vand.u32 %v2258, 2147483648
    %v2301 = vor.u32 1.1754944e-38, %v2300
    %v2302 = vsel %vm2299, %v2301, %v2297
    %v2303 = vmul.f32 1.0, %v2302
    %v2304 = vtanh.pop %v1384
    %v2305 = vmul.f32 %v2288, 0.0
    %v2306 = vmul.f32 %v2273, %v2304
    %v2307 = vadd.f32 %v2305, %v2306
    %v2308 = vtanh.pop %v2307
    %v2309 = vmul.f32 %v2303, %v2308
    %v2310 = vld [vmem:[#allocation8] sm:$0xff]
    %v2311 = vld [vmem:[#allocation8 + $0x8] sm:$0xff]
    %v2312 = vld [vmem:[#allocation8 + $0x10] sm:$0xff]
    %v2313 = vld [vmem:[#allocation8 + $0x18] sm:$0xff]
    %v2314 = vld [vmem:[#allocation8 + $0x20] sm:$0xff]
    %v2315 = vld [vmem:[#allocation8 + $0x28] sm:$0xff]
    %v2316 = vld [vmem:[#allocation8 + $0x30] sm:$0xff]
    %v2317 = vld [vmem:[#allocation8 + $0x38] sm:$0xff]
    %v2318 = vld [vmem:[#allocation8 + $0x40] sm:$0xff]
    %v2319 = vld [vmem:[#allocation8 + $0x48] sm:$0xff]
    %v2320 = vld [vmem:[#allocation8 + $0x50] sm:$0xff]
    %v2321 = vld [vmem:[#allocation8 + $0x58] sm:$0xff]
    %v2322 = vld [vmem:[#allocation8 + $0x60] sm:$0xff]
    %v2323 = vld [vmem:[#allocation8 + $0x68] sm:$0xff]
    %v2324 = vld [vmem:[#allocation8 + $0x70] sm:$0xff]
    %v2325 = vld [vmem:[#allocation8 + $0x78] sm:$0xff]
    %v2326 = vld [vmem:[#allocation8 + $0x80] sm:$0xff]
    %v2327 = vld [vmem:[#allocation8 + $0x88] sm:$0xff]
    %v2328 = vld [vmem:[#allocation8 + $0x90] sm:$0xff]
    %v2329 = vld [vmem:[#allocation8 + $0x98] sm:$0xff]
    %v2330 = vld [vmem:[#allocation8 + $0xa0] sm:$0xff]
    %v2331 = vld [vmem:[#allocation8 + $0xa8] sm:$0xff]
    %v2332 = vld [vmem:[#allocation8 + $0xb0] sm:$0xff]
    %v2333 = vld [vmem:[#allocation8 + $0xb8] sm:$0xff]
    %v2334 = vld [vmem:[#allocation8 + $0xc0] sm:$0xff]
    %v2335 = vld [vmem:[#allocation8 + $0xc8] sm:$0xff]
    %v2336 = vld [vmem:[#allocation8 + $0xd0] sm:$0xff]
    %v2337 = vld [vmem:[#allocation8 + $0xd8] sm:$0xff]
    %v2338 = vld [vmem:[#allocation8 + $0xe0] sm:$0xff]
    %v2339 = vld [vmem:[#allocation8 + $0xe8] sm:$0xff]
    %v2340 = vld [vmem:[#allocation8 + $0xf0] sm:$0xff]
    %v2341 = vld [vmem:[#allocation8 + $0xf8] sm:$0xff]
    %v2343 = vperm.slane %v98, 0
    %2345 = vmatpush.msra.mxu0 %v2325
    %2346 = vmatpush.msra.mxu0 %v2324
    %2347 = vmatpush.msra.mxu0 %v2323
    %2348 = vmatpush.msra.mxu0 %v2322
    %2349 = vmatpush.msra.mxu0 %v2321
    %2350 = vmatpush.msra.mxu0 %v2320
    %2351 = vmatpush.msra.mxu0 %v2319
    %2352 = vmatpush.msra.mxu0 %v2318
    %2353 = vmatpush.msra.mxu0 %v2317
    %2354 = vmatpush.msra.mxu0 %v2316
    %2355 = vmatpush.msra.mxu0 %v2315
    %2356 = vmatpush.msra.mxu0 %v2314
    %2357 = vmatpush.msra.mxu0 %v2313
    %2358 = vmatpush.msra.mxu0 %v2312
    %2359 = vmatpush.msra.mxu0 %v2311
    %2360 = vmatpush.msra.mxu0 %v2310
    %2361 = vmatmul.f32.gmra.mxu0 %v2246
    %v2362 = vpop.f32.mrf.mxu0
    %v2363 = vadd.f32 %v2343, %v2362
    %2364 = vdwg.mxu0
    %2365 = vmatpush.msra.mxu0 %v2341
    %2366 = vmatpush.msra.mxu0 %v2340
    %2367 = vmatpush.msra.mxu0 %v2339
    %2368 = vmatpush.msra.mxu0 %v2338
    %2369 = vmatpush.msra.mxu0 %v2337
    %2370 = vmatpush.msra.mxu0 %v2336
    %2371 = vmatpush.msra.mxu0 %v2335
    %2372 = vmatpush.msra.mxu0 %v2334
    %2373 = vmatpush.msra.mxu0 %v2333
    %2374 = vmatpush.msra.mxu0 %v2332
    %2375 = vmatpush.msra.mxu0 %v2331
    %2376 = vmatpush.msra.mxu0 %v2330
    %2377 = vmatpush.msra.mxu0 %v2329
    %2378 = vmatpush.msra.mxu0 %v2328
    %2379 = vmatpush.msra.mxu0 %v2327
    %2380 = vmatpush.msra.mxu0 %v2326
    %2381 = vmatmul.f32.gmra.mxu0 %v2309
    %v2382 = vpop.f32.mrf.mxu0
    %v2383 = vadd.f32 %v2363, %v2382
    %2384 = vdwg.mxu0
    %v2386 = vrot.slane %v2383, 1
    %2388 = vst [vmem:[#allocation11] sm:$0x1] %v2383
    %2389 = vst [vmem:[#allocation11 + $0x1] sm:$0x1] %v2386
    // Predicated region
    $region42: #{rcnn_forward.1} parent=1 // pred_check
      _
    $region43: #{rcnn_forward.1} parent=1 // pred_check_branch
      %2391 = sbr.rel (0) target = $region45
    $region44: #{rcnn_forward.1} parent=1 // pred_region
      %2393 = vsyncadd [#allocation4], 0
      %s2394 = sshll.u32 [#allocation11], 4
      %s2395 = int_to_ptr.vmem [resolvable:$true] %s2394
      %s2396 = sshll.u32 %s5, 4
      %s2397 = int_to_ptr.hbm [resolvable:$true] %s2396
      %2402 = dma.vmem_to_hbm [thread:$0]  %s2395, 32, %s2397, [#allocation4], 16, 16, 1
    $region45: #{rcnn_forward.1} parent=1 // pred_fallthru
      _
    // Predicated region
    $region46: #{rcnn_forward.1} parent=1 // pred_check
      _
    $region47: #{rcnn_forward.1} parent=1 // pred_check_branch
      %2404 = sbr.rel (0) target = $region49
    $region48: #{rcnn_forward.1} parent=1 // pred_region
      %2406 = dma.done [#allocation4], 32
    $region49: #{rcnn_forward.1} parent=1 // pred_fallthru
      _
    %2407 = vsyncpa [#allocation3], 1
    %2408 = vsyncpa [#allocation6], 1
    %2409 = vsyncpa [#allocation9], 1
    %2410 = vsyncpa [#allocation4], 1

</llo_original>
